<compile_context>
chip_gen: v5e
topology: v5e:2x2
jax: 0.10.0
libtpu: 0.0.40
codegen_flags: <defaults>
</compile_context>

<pallas_src>
from functools import partial

import jax
import jax.numpy as jnp
import numpy as np
from jax.experimental import pallas as pl
from jax.experimental.pallas import tpu as pltpu

EPS = 1e-5
LANE = 128
MATMUL_TILE_TARGET = 1024   # target row tile for the conv (matmul) passes
EW_TILE_TARGET = 4096       # target row tile for the pure elementwise passes


def _round_up(n, m):
    return (n + m - 1) // m * m


# --------------------------- generation-aware sizing ---------------------------

_VMEM_CACHE = {}


def _vmem_limit_bytes():
    """~3/4 of physical VMEM (64 MiB on v7x, 128 MiB on v5e/v6e), clamped."""
    if "limit" not in _VMEM_CACHE:
        phys = 64 * 1024 * 1024                       # conservative default (v7x)
        try:
            info = pltpu.get_tpu_info()
            for attr in ("vmem_capacity_bytes", "vmem_size_bytes", "vmem_bytes"):
                val = getattr(info, attr, None)
                if val:
                    phys = int(val)
                    break
        except Exception:
            pass
        _VMEM_CACHE["limit"] = max(32 * 1024 * 1024,
                                   min(3 * phys // 4, 112 * 1024 * 1024))
    return _VMEM_CACHE["limit"]


def _cparams():
    return pltpu.CompilerParams(
        dimension_semantics=("parallel",),            # row tiles are independent
        vmem_limit_bytes=_vmem_limit_bytes(),
    )


# --------------------------- Pallas kernels (hot path) ---------------------------

def _stats_block(acc):
    # (1, 2, C): row 0 = per-channel sum, row 1 = per-channel sum of squares (f32).
    s = jnp.sum(acc, axis=0, keepdims=True)
    ss = jnp.sum(acc * acc, axis=0, keepdims=True)
    return jnp.concatenate([s, ss], axis=0)[None]


def conv_matmul_stats_kernel(a_ref, w_ref, y_ref, stats_ref):
    # conv (im2col matmul) bf16 -> f32 accumulator; store y as bf16, stats from f32.
    acc = jnp.dot(a_ref[...], w_ref[...], preferred_element_type=jnp.float32)
    y_ref[...] = acc.astype(y_ref.dtype)
    stats_ref[...] = _stats_block(acc)


def dual_conv_matmul_stats_kernel(a_ref, w_ref, xsc_ref, wsc_ref,
                                  y_ref, stats_ref, ysc_ref, stats_sc_ref):
    # conv2 matmul + 1x1 shortcut conv matmul, both with per-tile BN partial stats.
    acc = jnp.dot(a_ref[...], w_ref[...], preferred_element_type=jnp.float32)
    y_ref[...] = acc.astype(y_ref.dtype)
    stats_ref[...] = _stats_block(acc)
    acc_sc = jnp.dot(xsc_ref[...], wsc_ref[...], preferred_element_type=jnp.float32)
    ysc_ref[...] = acc_sc.astype(ysc_ref.dtype)
    stats_sc_ref[...] = _stats_block(acc_sc)


def bn_relu_kernel(y_ref, scale_ref, bias_ref, out_ref):
    y = y_ref[...].astype(jnp.float32)
    out_ref[...] = jnp.maximum(y * scale_ref[...] + bias_ref[...], 0.0).astype(out_ref.dtype)


def bn_add_bn_relu_kernel(y_ref, s_ref, b_ref, ysc_ref, ssc_ref, bsc_ref, out_ref):
    left = y_ref[...].astype(jnp.float32) * s_ref[...] + b_ref[...]
    right = ysc_ref[...].astype(jnp.float32) * ssc_ref[...] + bsc_ref[...]
    out_ref[...] = jnp.maximum(left + right, 0.0)


def bn_add_identity_relu_kernel(y_ref, s_ref, b_ref, xsc_ref, out_ref):
    left = y_ref[...].astype(jnp.float32) * s_ref[...] + b_ref[...]
    xsc = xsc_ref[...]
    cpad = left.shape[-1] - xsc.shape[-1]             # static at trace time
    if cpad:
        zeros = jnp.zeros((xsc.shape[0], cpad), dtype=xsc.dtype)
        xsc = jnp.concatenate([xsc, zeros], axis=-1)
    out_ref[...] = jnp.maximum(left + xsc, 0.0)


# --------------------------- pallas_call wrappers ---------------------------

def _conv_matmul_stats(patches, wcol, tm):
    rows_pad, K = patches.shape
    C = wcol.shape[1]
    nt = rows_pad // tm
    return pl.pallas_call(
        conv_matmul_stats_kernel,
        out_shape=(jax.ShapeDtypeStruct((rows_pad, C), jnp.bfloat16),
                   jax.ShapeDtypeStruct((nt, 2, C), jnp.float32)),
        grid=(nt,),
        in_specs=[pl.BlockSpec((tm, K), lambda i: (i, 0)),
                  pl.BlockSpec((K, C), lambda i: (0, 0))],
        out_specs=(pl.BlockSpec((tm, C), lambda i: (i, 0)),
                   pl.BlockSpec((1, 2, C), lambda i: (i, 0, 0))),
        compiler_params=_cparams(),
    )(patches, wcol)


def _dual_conv_matmul_stats(patches, wcol, xsc, wsc, tm):
    rows_pad, K = patches.shape
    C = wcol.shape[1]
    Ks = wsc.shape[0]
    nt = rows_pad // tm
    return pl.pallas_call(
        dual_conv_matmul_stats_kernel,
        out_shape=(jax.ShapeDtypeStruct((rows_pad, C), jnp.bfloat16),
                   jax.ShapeDtypeStruct((nt, 2, C), jnp.float32),
                   jax.ShapeDtypeStruct((rows_pad, C), jnp.bfloat16),
                   jax.ShapeDtypeStruct((nt, 2, C), jnp.float32)),
        grid=(nt,),
        in_specs=[pl.BlockSpec((tm, K), lambda i: (i, 0)),
                  pl.BlockSpec((K, C), lambda i: (0, 0)),
                  pl.BlockSpec((tm, Ks), lambda i: (i, 0)),
                  pl.BlockSpec((Ks, C), lambda i: (0, 0))],
        out_specs=(pl.BlockSpec((tm, C), lambda i: (i, 0)),
                   pl.BlockSpec((1, 2, C), lambda i: (i, 0, 0)),
                   pl.BlockSpec((tm, C), lambda i: (i, 0)),
                   pl.BlockSpec((1, 2, C), lambda i: (i, 0, 0))),
        compiler_params=_cparams(),
    )(patches, wcol, xsc, wsc)


def _bn_relu(y, scale, bias, tile, out_dtype):
    rows_pad, C = y.shape
    nt = rows_pad // tile
    return pl.pallas_call(
        bn_relu_kernel,
        out_shape=jax.ShapeDtypeStruct((rows_pad, C), out_dtype),
        grid=(nt,),
        in_specs=[pl.BlockSpec((tile, C), lambda i: (i, 0)),
                  pl.BlockSpec((1, C), lambda i: (0, 0)),
                  pl.BlockSpec((1, C), lambda i: (0, 0))],
        out_specs=pl.BlockSpec((tile, C), lambda i: (i, 0)),
        compiler_params=_cparams(),
    )(y, scale, bias)


def _bn_add_bn_relu(y2, s2, b2, ysc, ssc, bsc, tile):
    rows_pad, C = y2.shape
    nt = rows_pad // tile
    return pl.pallas_call(
        bn_add_bn_relu_kernel,
        out_shape=jax.ShapeDtypeStruct((rows_pad, C), jnp.float32),
        grid=(nt,),
        in_specs=[pl.BlockSpec((tile, C), lambda i: (i, 0)),
                  pl.BlockSpec((1, C), lambda i: (0, 0)),
                  pl.BlockSpec((1, C), lambda i: (0, 0)),
                  pl.BlockSpec((tile, C), lambda i: (i, 0)),
                  pl.BlockSpec((1, C), lambda i: (0, 0)),
                  pl.BlockSpec((1, C), lambda i: (0, 0))],
        out_specs=pl.BlockSpec((tile, C), lambda i: (i, 0)),
        compiler_params=_cparams(),
    )(y2, s2, b2, ysc, ssc, bsc)


def _bn_add_identity_relu(y2, s2, b2, xsc, tile):
    rows_pad, C = y2.shape
    Cin = xsc.shape[1]
    nt = rows_pad // tile
    return pl.pallas_call(
        bn_add_identity_relu_kernel,
        out_shape=jax.ShapeDtypeStruct((rows_pad, C), jnp.float32),
        grid=(nt,),
        in_specs=[pl.BlockSpec((tile, C), lambda i: (i, 0)),
                  pl.BlockSpec((1, C), lambda i: (0, 0)),
                  pl.BlockSpec((1, C), lambda i: (0, 0)),
                  pl.BlockSpec((tile, Cin), lambda i: (i, 0))],
        out_specs=pl.BlockSpec((tile, C), lambda i: (i, 0)),
        compiler_params=_cparams(),
    )(y2, s2, b2, xsc)


# ------------------------------ JAX glue -------------------------------------

def im2col_3x3(x, stride):
    # x: (N, H, W, C), padding=1, 3x3 kernel -> (N*Ho*Wo, 9*C); keeps x's dtype.
    N, H, W, C = x.shape
    xp = jnp.pad(x, ((0, 0), (1, 1), (1, 1), (0, 0)))
    Ho = (H - 1) // stride + 1
    Wo = (W - 1) // stride + 1
    cols = []
    for kh in range(3):
        for kw in range(3):
            cols.append(xp[:, kh:kh + (Ho - 1) * stride + 1:stride,
                            kw:kw + (Wo - 1) * stride + 1:stride, :])
    patches = jnp.concatenate(cols, axis=-1)
    return patches.reshape(N * Ho * Wo, 9 * C), Ho, Wo


def _pad2(a, rows, cols):
    pr, pc = rows - a.shape[0], cols - a.shape[1]
    if pr == 0 and pc == 0:
        return a
    return jnp.pad(a, ((0, pr), (0, pc)))


def _pad_vec(v, cpad):
    pad = cpad - v.shape[-1]
    return v if pad == 0 else jnp.pad(v, (0, pad))


def _pick_kpad(K):
    # Lane-align the contraction dim only when the zero-padding adds <= 12.5% extra
    # HBM traffic to the (rows, K) patches array (kernel is HBM-bound otherwise).
    K128 = _round_up(K, 128)
    return K128 if K128 * 8 <= K * 9 else K


def _pick_tm(rows, target, K, Ks, C, dual, budget):
    rows128 = _round_up(rows, 128)
    # Prefer >= 2 row tiles so the "parallel" grid axis splits across TensorCores.
    cap = 128 if rows128 < 256 else min(target, (rows128 // 256) * 128)
    cap = max(128, cap)

    def step_bytes(t):  # rough double-buffered per-grid-step VMEM estimate
        per = t * K * 2 + K * C * 2 + t * C * 2 + 2 * C * 4
        if dual:
            per += t * Ks * 2 + Ks * C * 2 + t * C * 2 + 2 * C * 4
        return 2 * per

    while cap > 128 and step_bytes(cap) > budget:
        cap -= 128

    # Minimize row-padding waste over multiples of 128; prefer larger tm on ties.
    best_tm, best_pad = 128, None
    for t in range(128, cap + 1, 128):
        pad = _round_up(rows, t) - rows
        if best_pad is None or pad < best_pad or (pad == best_pad and t > best_tm):
            best_tm, best_pad = t, pad
    return best_tm


def _pick_ew_tile(nt, tm, bytes_per_row, budget, target=EW_TILE_TARGET):
    best = tm
    for k in range(1, nt + 1):
        if nt % k:
            continue
        t = tm * k
        if t > target or 2 * t * bytes_per_row > budget:
            continue
        if nt // k < 2 and nt != 1:
            continue                      # keep >= 2 grid steps for dual-TC chips
        best = max(best, t)
    return best


def _finalize_bn(stats, n_rows, gamma, beta):
    # Reduce per-tile (sum, sum_sq) partials -> per-channel scale/bias for
    # training-mode BatchNorm (batch mean, biased variance). Padded rows are exact
    # zeros in both sums, so dividing by the true row count is exact.
    s = jnp.sum(stats[:, 0, :], axis=0)
    ss = jnp.sum(stats[:, 1, :], axis=0)
    mean = s / n_rows
    var = jnp.maximum(ss / n_rows - mean * mean, 0.0)
    scale = gamma * jax.lax.rsqrt(var + EPS)
    bias = beta - mean * scale
    return scale.reshape(1, -1).astype(jnp.float32), bias.reshape(1, -1).astype(jnp.float32)


@partial(jax.jit, static_argnames=("stride", "tm_target"))
def residual_block_forward(x_nchw, params, stride=1, tm_target=MATMUL_TILE_TARGET):
    x = jnp.transpose(x_nchw, (0, 2, 3, 1)).astype(jnp.float32)    # NCHW -> NHWC
    x_bf = x.astype(jnp.bfloat16)                                  # MXU-ready copy
    N, H, W, Cin = x.shape
    Cout = params["w1"].shape[-1]
    C_PAD = _round_up(Cout, LANE)
    use_conv_shortcut = (stride != 1) or (Cin != Cout)

    # ---- conv1 (3x3, stride) im2col, bf16 patches ----
    patches1, Ho, Wo = im2col_3x3(x_bf, stride)
    rows = N * Ho * Wo

    K1p = _pick_kpad(9 * Cin)
    K2p = _pick_kpad(9 * Cout)
    Ks = Cin

    budget = int(_vmem_limit_bytes() * 0.8)
    tm = _pick_tm(rows, int(tm_target), max(K1p, K2p), Ks, C_PAD,
                  use_conv_shortcut, budget)
    rows_pad = _round_up(rows, tm)
    nt = rows_pad // tm

    if use_conv_shortcut:
        ew_bpr = 8 * C_PAD                       # y2(bf16)+ysc(bf16)+out(f32)
    else:
        ew_bpr = 6 * C_PAD + 4 * Cin             # y2(bf16)+xsc(f32)+out(f32)
    tm_ew = _pick_ew_tile(nt, tm, ew_bpr, budget)

    patches1 = _pad2(patches1, rows_pad, K1p)
    w1col = _pad2(params["w1"].reshape(9 * Cin, Cout), K1p, C_PAD).astype(jnp.bfloat16)
    g1 = _pad_vec(params["g1"], C_PAD)
    b1 = _pad_vec(params["b1"], C_PAD)

    y1_raw, stats1 = _conv_matmul_stats(patches1, w1col, tm)
    scale1, bias1 = _finalize_bn(stats1, float(rows), g1, b1)
    y1 = _bn_relu(y1_raw, scale1, bias1, tm_ew, jnp.bfloat16)      # (rows_pad, C_PAD) bf16

    # ---- conv2 (3x3, stride 1) + BN2, shortcut, add, ReLU ----
    y1_nhwc = y1[:rows, :Cout].reshape(N, Ho, Wo, Cout)
    patches2, _, _ = im2col_3x3(y1_nhwc, 1)                        # bf16
    patches2 = _pad2(patches2, rows_pad, K2p)
    w2col = _pad2(params["w2"].reshape(9 * Cout, Cout), K2p, C_PAD).astype(jnp.bfloat16)
    g2 = _pad_vec(params["g2"], C_PAD)
    b2 = _pad_vec(params["b2"], C_PAD)

    if use_conv_shortcut:
        xsc = x_bf[:, ::stride, ::stride, :].reshape(rows, Cin)
        xsc = _pad2(xsc, rows_pad, Ks)
        wsc = _pad2(params["wsc"], Ks, C_PAD).astype(jnp.bfloat16)
        gsc = _pad_vec(params["gsc"], C_PAD)
        bsc = _pad_vec(params["bsc"], C_PAD)

        y2_raw, stats2, ysc_raw, stats_sc = _dual_conv_matmul_stats(
            patches2, w2col, xsc, wsc, tm)
        scale2, bias2 = _finalize_bn(stats2, float(rows), g2, b2)
        scale_sc, bias_sc = _finalize_bn(stats_sc, float(rows), gsc, bsc)
        out = _bn_add_bn_relu(y2_raw, scale2, bias2, ysc_raw, scale_sc, bias_sc, tm_ew)
    else:
        xsc = _pad2(x.reshape(rows, Cin), rows_pad, Cin)           # exact f32 identity
        y2_raw, stats2 = _conv_matmul_stats(patches2, w2col, tm)
        scale2, bias2 = _finalize_bn(stats2, float(rows), g2, b2)
        out = _bn_add_identity_relu(y2_raw, scale2, bias2, xsc, tm_ew)

    out = out[:rows, :Cout].reshape(N, Ho, Wo, Cout)
    return out.transpose(0, 3, 1, 2)                               # back to NCHW


# ------------------------------ reference & test ------------------------------

def init_params(key, cin, cout, stride):
    k1, k2, k3, k4, k5 = jax.random.split(key, 5)
    p = {
        "w1": jax.random.normal(k1, (3, 3, cin, cout), jnp.float32) * 0.1,
        "g1": 1.0 + 0.1 * jax.random.normal(k4, (cout,), jnp.float32),
        "b1": 0.1 * jax.random.normal(k5, (cout,), jnp.float32),
        "w2": jax.random.normal(k2, (3, 3, cout, cout), jnp.float32) * 0.1,
        "g2": jnp.ones((cout,), jnp.float32),
        "b2": jnp.zeros((cout,), jnp.float32),
    }
    if stride != 1 or cin != cout:
        p["wsc"] = jax.random.normal(k3, (cin, cout), jnp.float32) * 0.1
        p["gsc"] = jnp.ones((cout,), jnp.float32)
        p["bsc"] = jnp.zeros((cout,), jnp.float32)
    return p


def reference_forward(x_nchw, params, stride=1):
    # Pure-JAX f32 reference (same bf16 conv-input quantization as the kernel's MXU path).
    x = jnp.transpose(x_nchw, (0, 2, 3, 1)).astype(jnp.float32)
    dn = ("NHWC", "HWIO", "NHWC")

    def conv(a, w, s, pad):
        return jax.lax.conv_general_dilated(
            a.astype(jnp.bfloat16), w.astype(jnp.bfloat16), (s, s), pad,
            dimension_numbers=dn, preferred_element_type=jnp.float32)

    def bn(y, g, b):
        m = jnp.mean(y, axis=(0, 1, 2), keepdims=True)
        v = jnp.mean((y - m) ** 2, axis=(0, 1, 2), keepdims=True)
        return (y - m) * jax.lax.rsqrt(v + EPS) * g.reshape(1, 1, 1, -1) + b.reshape(1, 1, 1, -1)

    y = conv(x, params["w1"], stride, [(1, 1), (1, 1)])
    y = jax.nn.relu(bn(y, params["g1"], params["b1"]))
    y = conv(y, params["w2"], 1, [(1, 1), (1, 1)])
    y = bn(y, params["g2"], params["b2"])

    cin, cout = x.shape[-1], params["w1"].shape[-1]
    if stride != 1 or cin != cout:
        wsc = params["wsc"].reshape(1, 1, cin, cout)
        sc = bn(conv(x, wsc, stride, [(0, 0), (0, 0)]), params["gsc"], params["bsc"])
    else:
        sc = x
    return jax.nn.relu(y + sc).transpose(0, 3, 1, 2)


if __name__ == "__main__":
    key = jax.random.PRNGKey(0)
    configs = [
        # (N, Cin, H, W, Cout, stride)
        (2, 4, 16, 16, 8, 2),   # conv shortcut path (channel change + stride 2)
        (2, 8, 16, 16, 8, 1),   # identity shortcut path, multi-tile cross-tile BN stats
    ]
    for (N, Cin, H, W, Cout, stride) in configs:
        kx, kp, key = jax.random.split(key, 3)
        x = jax.random.normal(kx, (N, Cin, H, W), jnp.float32)     # NCHW, like PyTorch
        params = init_params(kp, Cin, Cout, stride)

        out = residual_block_forward(x, params, stride=stride)
        out = jax.block_until_ready(out)

        ref = reference_forward(x, params, stride=stride)
        # Tolerance covers bf16-stored conv intermediates (BN stats themselves are f32-exact).
        np.testing.assert_allclose(np.asarray(out), np.asarray(ref), rtol=2e-2, atol=3e-2)
    print("KERNEL_OK")
</pallas_src>

<mosaic_0001>
module attributes {stable_mosaic.version = 11 : i64} {
  func.func @conv_matmul_stats_kernel(%arg0: i32, %arg1: memref<128x36xbf16, #tpu.memory_space<vmem>>, %arg2: memref<36x128xbf16, #tpu.memory_space<vmem>>, %arg3: memref<128x128xbf16, #tpu.memory_space<vmem>>, %arg4: memref<1x2x128xf32, #tpu.memory_space<vmem>>) attributes {dimension_semantics = [#tpu.dimension_semantics<parallel>], iteration_bounds = array<i64: 1>, scalar_prefetch = 0 : i64, scratch_operands = 0 : i64, tpu.core_type = #tpu.core_type<tc>, window_params = [{transform_indices = @transform_0, window_bounds = array<i64: 128, 36>}, {pipeline_mode = #tpu.pipeline_mode<synchronous>, transform_indices = @transform_1, window_bounds = array<i64: 36, 128>}, {transform_indices = @transform_2, window_bounds = array<i64: 128, 128>}, {transform_indices = @transform_3, window_bounds = array<i64: 1, 2, 128>}]} {
    %c0 = arith.constant 0 : index
    %c0_0 = arith.constant 0 : index
    %0 = vector.load %arg1[%c0, %c0_0] : memref<128x36xbf16, #tpu.memory_space<vmem>>, vector<128x36xbf16>
    %c0_1 = arith.constant 0 : index
    %c0_2 = arith.constant 0 : index
    %1 = vector.load %arg2[%c0_1, %c0_2] : memref<36x128xbf16, #tpu.memory_space<vmem>>, vector<36x128xbf16>
    %cst = arith.constant dense<0.000000e+00> : vector<128x128xf32>
    %2 = tpu.matmul %0, %1, %cst {dimension_numbers = #tpu.dot_dimension_numbers<[1], [0], [0], [1], [0, 0, 1, 1], [], []>} : vector<128x36xbf16>, vector<36x128xbf16>, vector<128x128xf32> -> vector<128x128xf32>
    %3 = arith.truncf %2 : vector<128x128xf32> to vector<128x128xbf16>
    %c0_3 = arith.constant 0 : index
    %c0_4 = arith.constant 0 : index
    %4 = vector.load %arg3[%c0_3, %c0_4] : memref<128x128xbf16, #tpu.memory_space<vmem>>, vector<128x128xbf16>
    tpu.vector_store %arg3[%c0_3, %c0_4], %3 {strides = array<i32>} : memref<128x128xbf16, #tpu.memory_space<vmem>>, vector<128x128xbf16>,
    %cst_5 = arith.constant dense<0.000000e+00> : vector<128xf32>
    %5 = vector.multi_reduction <add>, %2, %cst_5 [0] : vector<128x128xf32> to vector<128xf32>
    %6 = vector.shape_cast %5 : vector<128xf32> to vector<1x128xf32>
    %7 = arith.mulf %2, %2 : vector<128x128xf32>
    %cst_6 = arith.constant dense<0.000000e+00> : vector<128xf32>
    %8 = vector.multi_reduction <add>, %7, %cst_6 [0] : vector<128x128xf32> to vector<128xf32>
    %9 = vector.shape_cast %8 : vector<128xf32> to vector<1x128xf32>
    %10 = tpu.concatenate %6, %9 in 0 : vector<1x128xf32>, vector<1x128xf32> -> vector<2x128xf32>
    %11 = vector.shape_cast %10 : vector<2x128xf32> to vector<1x2x128xf32>
    %c0_7 = arith.constant 0 : index
    %c0_8 = arith.constant 0 : index
    %c0_9 = arith.constant 0 : index
    %12 = vector.load %arg4[%c0_7, %c0_8, %c0_9] : memref<1x2x128xf32, #tpu.memory_space<vmem>>, vector<1x2x128xf32>
    tpu.vector_store %arg4[%c0_7, %c0_8, %c0_9], %11 {strides = array<i32>} : memref<1x2x128xf32, #tpu.memory_space<vmem>>, vector<1x2x128xf32>,
    return
  }
  func.func @transform_0(%arg0: i32) -> (i32, i32) {
    %c0_i32 = arith.constant 0 : i32
    %c0_i32_0 = arith.constant 0 : i32
    return %arg0, %c0_i32 : i32, i32
  }
  func.func @transform_1(%arg0: i32) -> (i32, i32) {
    %c0_i32 = arith.constant 0 : i32
    %c0_i32_0 = arith.constant 0 : i32
    %c0_i32_1 = arith.constant 0 : i32
    return %c0_i32, %c0_i32_0 : i32, i32
  }
  func.func @transform_2(%arg0: i32) -> (i32, i32) {
    %c0_i32 = arith.constant 0 : i32
    %c0_i32_0 = arith.constant 0 : i32
    return %arg0, %c0_i32 : i32, i32
  }
  func.func @transform_3(%arg0: i32) -> (i32, i32, i32) {
    %c0_i32 = arith.constant 0 : i32
    %c0_i32_0 = arith.constant 0 : i32
    %c0_i32_1 = arith.constant 0 : i32
    return %arg0, %c0_i32, %c0_i32_0 : i32, i32, i32
  }
}

module attributes {stable_mosaic.version = 11 : i64} {
  func.func @bn_relu_kernel(%arg0: i32, %arg1: memref<128x128xbf16, #tpu.memory_space<vmem>>, %arg2: memref<1x128xf32, #tpu.memory_space<vmem>>, %arg3: memref<1x128xf32, #tpu.memory_space<vmem>>, %arg4: memref<128x128xbf16, #tpu.memory_space<vmem>>) attributes {dimension_semantics = [#tpu.dimension_semantics<parallel>], iteration_bounds = array<i64: 1>, scalar_prefetch = 0 : i64, scratch_operands = 0 : i64, tpu.core_type = #tpu.core_type<tc>, window_params = [{transform_indices = @transform_0, window_bounds = array<i64: 128, 128>}, {pipeline_mode = #tpu.pipeline_mode<synchronous>, transform_indices = @transform_1, window_bounds = array<i64: 1, 128>}, {pipeline_mode = #tpu.pipeline_mode<synchronous>, transform_indices = @transform_2, window_bounds = array<i64: 1, 128>}, {transform_indices = @transform_3, window_bounds = array<i64: 128, 128>}]} {
    %c0 = arith.constant 0 : index
    %c0_0 = arith.constant 0 : index
    %0 = vector.load %arg1[%c0, %c0_0] : memref<128x128xbf16, #tpu.memory_space<vmem>>, vector<128x128xbf16>
    %1 = arith.extf %0 : vector<128x128xbf16> to vector<128x128xf32>
    %c0_1 = arith.constant 0 : index
    %c0_2 = arith.constant 0 : index
    %2 = vector.load %arg2[%c0_1, %c0_2] : memref<1x128xf32, #tpu.memory_space<vmem>>, vector<1x128xf32>
    %3 = vector.broadcast %2 : vector<1x128xf32> to vector<128x128xf32>
    %4 = arith.mulf %1, %3 : vector<128x128xf32>
    %c0_3 = arith.constant 0 : index
    %c0_4 = arith.constant 0 : index
    %5 = vector.load %arg3[%c0_3, %c0_4] : memref<1x128xf32, #tpu.memory_space<vmem>>, vector<1x128xf32>
    %6 = vector.broadcast %5 : vector<1x128xf32> to vector<128x128xf32>
    %7 = arith.addf %4, %6 : vector<128x128xf32>
    %cst = arith.constant 0.000000e+00 : f32
    %8 = vector.broadcast %cst : f32 to vector<128x128xf32>
    %9 = arith.maximumf %7, %8 : vector<128x128xf32>
    %10 = arith.truncf %9 : vector<128x128xf32> to vector<128x128xbf16>
    %c0_5 = arith.constant 0 : index
    %c0_6 = arith.constant 0 : index
    %11 = vector.load %arg4[%c0_5, %c0_6] : memref<128x128xbf16, #tpu.memory_space<vmem>>, vector<128x128xbf16>
    tpu.vector_store %arg4[%c0_5, %c0_6], %10 {strides = array<i32>} : memref<128x128xbf16, #tpu.memory_space<vmem>>, vector<128x128xbf16>,
    return
  }
  func.func @transform_0(%arg0: i32) -> (i32, i32) {
    %c0_i32 = arith.constant 0 : i32
    %c0_i32_0 = arith.constant 0 : i32
    return %arg0, %c0_i32 : i32, i32
  }
  func.func @transform_1(%arg0: i32) -> (i32, i32) {
    %c0_i32 = arith.constant 0 : i32
    %c0_i32_0 = arith.constant 0 : i32
    %c0_i32_1 = arith.constant 0 : i32
    return %c0_i32, %c0_i32_0 : i32, i32
  }
  func.func @transform_2(%arg0: i32) -> (i32, i32) {
    %c0_i32 = arith.constant 0 : i32
    %c0_i32_0 = arith.constant 0 : i32
    %c0_i32_1 = arith.constant 0 : i32
    return %c0_i32, %c0_i32_0 : i32, i32
  }
  func.func @transform_3(%arg0: i32) -> (i32, i32) {
    %c0_i32 = arith.constant 0 : i32
    %c0_i32_0 = arith.constant 0 : i32
    return %arg0, %c0_i32 : i32, i32
  }
}

module attributes {stable_mosaic.version = 11 : i64} {
  func.func @bn_add_bn_relu_kernel(%arg0: i32, %arg1: memref<128x128xbf16, #tpu.memory_space<vmem>>, %arg2: memref<1x128xf32, #tpu.memory_space<vmem>>, %arg3: memref<1x128xf32, #tpu.memory_space<vmem>>, %arg4: memref<128x128xbf16, #tpu.memory_space<vmem>>, %arg5: memref<1x128xf32, #tpu.memory_space<vmem>>, %arg6: memref<1x128xf32, #tpu.memory_space<vmem>>, %arg7: memref<128x128xf32, #tpu.memory_space<vmem>>) attributes {dimension_semantics = [#tpu.dimension_semantics<parallel>], iteration_bounds = array<i64: 1>, scalar_prefetch = 0 : i64, scratch_operands = 0 : i64, tpu.core_type = #tpu.core_type<tc>, window_params = [{transform_indices = @transform_0, window_bounds = array<i64: 128, 128>}, {pipeline_mode = #tpu.pipeline_mode<synchronous>, transform_indices = @transform_1, window_bounds = array<i64: 1, 128>}, {pipeline_mode = #tpu.pipeline_mode<synchronous>, transform_indices = @transform_2, window_bounds = array<i64: 1, 128>}, {transform_indices = @transform_3, window_bounds = array<i64: 128, 128>}, {pipeline_mode = #tpu.pipeline_mode<synchronous>, transform_indices = @transform_4, window_bounds = array<i64: 1, 128>}, {pipeline_mode = #tpu.pipeline_mode<synchronous>, transform_indices = @transform_5, window_bounds = array<i64: 1, 128>}, {transform_indices = @transform_6, window_bounds = array<i64: 128, 128>}]} {
    %c0 = arith.constant 0 : index
    %c0_0 = arith.constant 0 : index
    %0 = vector.load %arg1[%c0, %c0_0] : memref<128x128xbf16, #tpu.memory_space<vmem>>, vector<128x128xbf16>
    %1 = arith.extf %0 : vector<128x128xbf16> to vector<128x128xf32>
    %c0_1 = arith.constant 0 : index
    %c0_2 = arith.constant 0 : index
    %2 = vector.load %arg2[%c0_1, %c0_2] : memref<1x128xf32, #tpu.memory_space<vmem>>, vector<1x128xf32>
    %3 = vector.broadcast %2 : vector<1x128xf32> to vector<128x128xf32>
    %4 = arith.mulf %1, %3 : vector<128x128xf32>
    %c0_3 = arith.constant 0 : index
    %c0_4 = arith.constant 0 : index
    %5 = vector.load %arg3[%c0_3, %c0_4] : memref<1x128xf32, #tpu.memory_space<vmem>>, vector<1x128xf32>
    %6 = vector.broadcast %5 : vector<1x128xf32> to vector<128x128xf32>
    %7 = arith.addf %4, %6 : vector<128x128xf32>
    %c0_5 = arith.constant 0 : index
    %c0_6 = arith.constant 0 : index
    %8 = vector.load %arg4[%c0_5, %c0_6] : memref<128x128xbf16, #tpu.memory_space<vmem>>, vector<128x128xbf16>
    %9 = arith.extf %8 : vector<128x128xbf16> to vector<128x128xf32>
    %c0_7 = arith.constant 0 : index
    %c0_8 = arith.constant 0 : index
    %10 = vector.load %arg5[%c0_7, %c0_8] : memref<1x128xf32, #tpu.memory_space<vmem>>, vector<1x128xf32>
    %11 = vector.broadcast %10 : vector<1x128xf32> to vector<128x128xf32>
    %12 = arith.mulf %9, %11 : vector<128x128xf32>
    %c0_9 = arith.constant 0 : index
    %c0_10 = arith.constant 0 : index
    %13 = vector.load %arg6[%c0_9, %c0_10] : memref<1x128xf32, #tpu.memory_space<vmem>>, vector<1x128xf32>
    %14 = vector.broadcast %13 : vector<1x128xf32> to vector<128x128xf32>
    %15 = arith.addf %12, %14 : vector<128x128xf32>
    %16 = arith.addf %7, %15 : vector<128x128xf32>
    %cst = arith.constant 0.000000e+00 : f32
    %17 = vector.broadcast %cst : f32 to vector<128x128xf32>
    %18 = arith.maximumf %16, %17 : vector<128x128xf32>
    %c0_11 = arith.constant 0 : index
    %c0_12 = arith.constant 0 : index
    %19 = vector.load %arg7[%c0_11, %c0_12] : memref<128x128xf32, #tpu.memory_space<vmem>>, vector<128x128xf32>
    tpu.vector_store %arg7[%c0_11, %c0_12], %18 {strides = array<i32>} : memref<128x128xf32, #tpu.memory_space<vmem>>, vector<128x128xf32>,
    return
  }
  func.func @transform_0(%arg0: i32) -> (i32, i32) {
    %c0_i32 = arith.constant 0 : i32
    %c0_i32_0 = arith.constant 0 : i32
    return %arg0, %c0_i32 : i32, i32
  }
  func.func @transform_1(%arg0: i32) -> (i32, i32) {
    %c0_i32 = arith.constant 0 : i32
    %c0_i32_0 = arith.constant 0 : i32
    %c0_i32_1 = arith.constant 0 : i32
    return %c0_i32, %c0_i32_0 : i32, i32
  }
  func.func @transform_2(%arg0: i32) -> (i32, i32) {
    %c0_i32 = arith.constant 0 : i32
    %c0_i32_0 = arith.constant 0 : i32
    %c0_i32_1 = arith.constant 0 : i32
    return %c0_i32, %c0_i32_0 : i32, i32
  }
  func.func @transform_3(%arg0: i32) -> (i32, i32) {
    %c0_i32 = arith.constant 0 : i32
    %c0_i32_0 = arith.constant 0 : i32
    return %arg0, %c0_i32 : i32, i32
  }
  func.func @transform_4(%arg0: i32) -> (i32, i32) {
    %c0_i32 = arith.constant 0 : i32
    %c0_i32_0 = arith.constant 0 : i32
    %c0_i32_1 = arith.constant 0 : i32
    return %c0_i32, %c0_i32_0 : i32, i32
  }
  func.func @transform_5(%arg0: i32) -> (i32, i32) {
    %c0_i32 = arith.constant 0 : i32
    %c0_i32_0 = arith.constant 0 : i32
    %c0_i32_1 = arith.constant 0 : i32
    return %c0_i32, %c0_i32_0 : i32, i32
  }
  func.func @transform_6(%arg0: i32) -> (i32, i32) {
    %c0_i32 = arith.constant 0 : i32
    %c0_i32_0 = arith.constant 0 : i32
    return %arg0, %c0_i32 : i32, i32
  }
}

module attributes {stable_mosaic.version = 11 : i64} {
  func.func @dual_conv_matmul_stats_kernel(%arg0: i32, %arg1: memref<128x72xbf16, #tpu.memory_space<vmem>>, %arg2: memref<72x128xbf16, #tpu.memory_space<vmem>>, %arg3: memref<128x4xbf16, #tpu.memory_space<vmem>>, %arg4: memref<4x128xbf16, #tpu.memory_space<vmem>>, %arg5: memref<128x128xbf16, #tpu.memory_space<vmem>>, %arg6: memref<1x2x128xf32, #tpu.memory_space<vmem>>, %arg7: memref<128x128xbf16, #tpu.memory_space<vmem>>, %arg8: memref<1x2x128xf32, #tpu.memory_space<vmem>>) attributes {dimension_semantics = [#tpu.dimension_semantics<parallel>], iteration_bounds = array<i64: 1>, scalar_prefetch = 0 : i64, scratch_operands = 0 : i64, tpu.core_type = #tpu.core_type<tc>, window_params = [{transform_indices = @transform_0, window_bounds = array<i64: 128, 72>}, {pipeline_mode = #tpu.pipeline_mode<synchronous>, transform_indices = @transform_1, window_bounds = array<i64: 72, 128>}, {transform_indices = @transform_2, window_bounds = array<i64: 128, 4>}, {pipeline_mode = #tpu.pipeline_mode<synchronous>, transform_indices = @transform_3, window_bounds = array<i64: 4, 128>}, {transform_indices = @transform_4, window_bounds = array<i64: 128, 128>}, {transform_indices = @transform_5, window_bounds = array<i64: 1, 2, 128>}, {transform_indices = @transform_6, window_bounds = array<i64: 128, 128>}, {transform_indices = @transform_7, window_bounds = array<i64: 1, 2, 128>}]} {
    %c0 = arith.constant 0 : index
    %c0_0 = arith.constant 0 : index
    %0 = vector.load %arg1[%c0, %c0_0] : memref<128x72xbf16, #tpu.memory_space<vmem>>, vector<128x72xbf16>
    %c0_1 = arith.constant 0 : index
    %c0_2 = arith.constant 0 : index
    %1 = vector.load %arg2[%c0_1, %c0_2] : memref<72x128xbf16, #tpu.memory_space<vmem>>, vector<72x128xbf16>
    %cst = arith.constant dense<0.000000e+00> : vector<128x128xf32>
    %2 = tpu.matmul %0, %1, %cst {dimension_numbers = #tpu.dot_dimension_numbers<[1], [0], [0], [1], [0, 0, 1, 1], [], []>} : vector<128x72xbf16>, vector<72x128xbf16>, vector<128x128xf32> -> vector<128x128xf32>
    %3 = arith.truncf %2 : vector<128x128xf32> to vector<128x128xbf16>
    %c0_3 = arith.constant 0 : index
    %c0_4 = arith.constant 0 : index
    %4 = vector.load %arg5[%c0_3, %c0_4] : memref<128x128xbf16, #tpu.memory_space<vmem>>, vector<128x128xbf16>
    tpu.vector_store %arg5[%c0_3, %c0_4], %3 {strides = array<i32>} : memref<128x128xbf16, #tpu.memory_space<vmem>>, vector<128x128xbf16>,
    %cst_5 = arith.constant dense<0.000000e+00> : vector<128xf32>
    %5 = vector.multi_reduction <add>, %2, %cst_5 [0] : vector<128x128xf32> to vector<128xf32>
    %6 = vector.shape_cast %5 : vector<128xf32> to vector<1x128xf32>
    %7 = arith.mulf %2, %2 : vector<128x128xf32>
    %cst_6 = arith.constant dense<0.000000e+00> : vector<128xf32>
    %8 = vector.multi_reduction <add>, %7, %cst_6 [0] : vector<128x128xf32> to vector<128xf32>
    %9 = vector.shape_cast %8 : vector<128xf32> to vector<1x128xf32>
    %10 = tpu.concatenate %6, %9 in 0 : vector<1x128xf32>, vector<1x128xf32> -> vector<2x128xf32>
    %11 = vector.shape_cast %10 : vector<2x128xf32> to vector<1x2x128xf32>
    %c0_7 = arith.constant 0 : index
    %c0_8 = arith.constant 0 : index
    %c0_9 = arith.constant 0 : index
    %12 = vector.load %arg6[%c0_7, %c0_8, %c0_9] : memref<1x2x128xf32, #tpu.memory_space<vmem>>, vector<1x2x128xf32>
    tpu.vector_store %arg6[%c0_7, %c0_8, %c0_9], %11 {strides = array<i32>} : memref<1x2x128xf32, #tpu.memory_space<vmem>>, vector<1x2x128xf32>,
    %c0_10 = arith.constant 0 : index
    %c0_11 = arith.constant 0 : index
    %13 = vector.load %arg3[%c0_10, %c0_11] : memref<128x4xbf16, #tpu.memory_space<vmem>>, vector<128x4xbf16>
    %c0_12 = arith.constant 0 : index
    %c0_13 = arith.constant 0 : index
    %14 = vector.load %arg4[%c0_12, %c0_13] : memref<4x128xbf16, #tpu.memory_space<vmem>>, vector<4x128xbf16>
    %cst_14 = arith.constant dense<0.000000e+00> : vector<128x128xf32>
    %15 = tpu.matmul %13, %14, %cst_14 {dimension_numbers = #tpu.dot_dimension_numbers<[1], [0], [0], [1], [0, 0, 1, 1], [], []>} : vector<128x4xbf16>, vector<4x128xbf16>, vector<128x128xf32> -> vector<128x128xf32>
    %16 = arith.truncf %15 : vector<128x128xf32> to vector<128x128xbf16>
    %c0_15 = arith.constant 0 : index
    %c0_16 = arith.constant 0 : index
    %17 = vector.load %arg7[%c0_15, %c0_16] : memref<128x128xbf16, #tpu.memory_space<vmem>>, vector<128x128xbf16>
    tpu.vector_store %arg7[%c0_15, %c0_16], %16 {strides = array<i32>} : memref<128x128xbf16, #tpu.memory_space<vmem>>, vector<128x128xbf16>,
    %cst_17 = arith.constant dense<0.000000e+00> : vector<128xf32>
    %18 = vector.multi_reduction <add>, %15, %cst_17 [0] : vector<128x128xf32> to vector<128xf32>
    %19 = vector.shape_cast %18 : vector<128xf32> to vector<1x128xf32>
    %20 = arith.mulf %15, %15 : vector<128x128xf32>
    %cst_18 = arith.constant dense<0.000000e+00> : vector<128xf32>
    %21 = vector.multi_reduction <add>, %20, %cst_18 [0] : vector<128x128xf32> to vector<128xf32>
    %22 = vector.shape_cast %21 : vector<128xf32> to vector<1x128xf32>
    %23 = tpu.concatenate %19, %22 in 0 : vector<1x128xf32>, vector<1x128xf32> -> vector<2x128xf32>
    %24 = vector.shape_cast %23 : vector<2x128xf32> to vector<1x2x128xf32>
    %c0_19 = arith.constant 0 : index
    %c0_20 = arith.constant 0 : index
    %c0_21 = arith.constant 0 : index
    %25 = vector.load %arg8[%c0_19, %c0_20, %c0_21] : memref<1x2x128xf32, #tpu.memory_space<vmem>>, vector<1x2x128xf32>
    tpu.vector_store %arg8[%c0_19, %c0_20, %c0_21], %24 {strides = array<i32>} : memref<1x2x128xf32, #tpu.memory_space<vmem>>, vector<1x2x128xf32>,
    return
  }
  func.func @transform_0(%arg0: i32) -> (i32, i32) {
    %c0_i32 = arith.constant 0 : i32
    %c0_i32_0 = arith.constant 0 : i32
    return %arg0, %c0_i32 : i32, i32
  }
  func.func @transform_1(%arg0: i32) -> (i32, i32) {
    %c0_i32 = arith.constant 0 : i32
    %c0_i32_0 = arith.constant 0 : i32
    %c0_i32_1 = arith.constant 0 : i32
    return %c0_i32, %c0_i32_0 : i32, i32
  }
  func.func @transform_2(%arg0: i32) -> (i32, i32) {
    %c0_i32 = arith.constant 0 : i32
    %c0_i32_0 = arith.constant 0 : i32
    return %arg0, %c0_i32 : i32, i32
  }
  func.func @transform_3(%arg0: i32) -> (i32, i32) {
    %c0_i32 = arith.constant 0 : i32
    %c0_i32_0 = arith.constant 0 : i32
    %c0_i32_1 = arith.constant 0 : i32
    return %c0_i32, %c0_i32_0 : i32, i32
  }
  func.func @transform_4(%arg0: i32) -> (i32, i32) {
    %c0_i32 = arith.constant 0 : i32
    %c0_i32_0 = arith.constant 0 : i32
    return %arg0, %c0_i32 : i32, i32
  }
  func.func @transform_5(%arg0: i32) -> (i32, i32, i32) {
    %c0_i32 = arith.constant 0 : i32
    %c0_i32_0 = arith.constant 0 : i32
    %c0_i32_1 = arith.constant 0 : i32
    return %arg0, %c0_i32, %c0_i32_0 : i32, i32, i32
  }
  func.func @transform_6(%arg0: i32) -> (i32, i32) {
    %c0_i32 = arith.constant 0 : i32
    %c0_i32_0 = arith.constant 0 : i32
    return %arg0, %c0_i32 : i32, i32
  }
  func.func @transform_7(%arg0: i32) -> (i32, i32, i32) {
    %c0_i32 = arith.constant 0 : i32
    %c0_i32_0 = arith.constant 0 : i32
    %c0_i32_1 = arith.constant 0 : i32
    return %arg0, %c0_i32, %c0_i32_0 : i32, i32, i32
  }
}

</mosaic_0001>

<llo_original>
// kernel: residual_block_forward.5
$region0: #{residual_block_forward.5}
  #allocation0 [shape = 'u32[]', space=smem, size = 0x4, offset = 0x4, fixed_abs, tag = 'smem constant byte address 0x4 - core index']
  #allocation1 [shape = 'u32[72,128]{1,0:T(1,128)}', space=vmem, size = 0x9000, scoped, tag = 'internal scratch']
  %s0 = inlined_call_operand.vmem [shape: bf16[128,128], index: 0, kind: input, shape index: {}]
  %s1 = inlined_call_operand.vmem [shape: f32[1,128], index: 1, kind: input, shape index: {}]
  %s2 = inlined_call_operand.vmem [shape: f32[1,128], index: 2, kind: input, shape index: {}]
  %s3 = inlined_call_operand.vmem [shape: bf16[128,128], index: 3, kind: output, shape index: {}]
  %s4 = sld [smem:[#allocation0]]
  $region22: #{residual_block_forward.5} parent=0
    _
  %s6 = ssub.s32 1, %s4
  %s7 = scalar_select 0, %s6, %s4
  // Predicated region
  $region2: #{residual_block_forward.5} parent=0 // pred_check
    _
  $region3: #{residual_block_forward.5} parent=0 // pred_check_branch
    %9 = sbr.rel (0) target = $region5
  $region4: #{residual_block_forward.5} parent=0 // pred_region
    _
  $region5: #{residual_block_forward.5} parent=0 // pred_fallthru
    _
  // Predicated region
  $region6: #{residual_block_forward.5} parent=0 // pred_check
    _
  $region7: #{residual_block_forward.5} parent=0 // pred_check_branch
    %11 = sbr.rel (0) target = $region9
  $region8: #{residual_block_forward.5} parent=0 // pred_region
    _
  $region9: #{residual_block_forward.5} parent=0 // pred_fallthru
    _
  // Predicated region
  $region10: #{residual_block_forward.5} parent=0 // pred_check
    _
  $region11: #{residual_block_forward.5} parent=0 // pred_check_branch
    %13 = sbr.rel (0) target = $region13
  $region12: #{residual_block_forward.5} parent=0 // pred_region
    _
  $region13: #{residual_block_forward.5} parent=0 // pred_fallthru
    _
  %v14 = vld [vmem:[%s0] sm:$0xf]
  %v15 = vld [vmem:[%s0 + $0x4] sm:$0xf]
  %v16 = vld [vmem:[%s0 + $0x8] sm:$0xf]
  %v17 = vld [vmem:[%s0 + $0xc] sm:$0xf]
  %v18 = vld [vmem:[%s0 + $0x10] sm:$0xf]
  %v19 = vld [vmem:[%s0 + $0x14] sm:$0xf]
  %v20 = vld [vmem:[%s0 + $0x18] sm:$0xf]
  %v21 = vld [vmem:[%s0 + $0x1c] sm:$0xf]
  %v22 = vld [vmem:[%s0 + $0x20] sm:$0xf]
  %v23 = vld [vmem:[%s0 + $0x24] sm:$0xf]
  %v24 = vld [vmem:[%s0 + $0x28] sm:$0xf]
  %v25 = vld [vmem:[%s0 + $0x2c] sm:$0xf]
  %v26 = vld [vmem:[%s0 + $0x30] sm:$0xf]
  %v27 = vld [vmem:[%s0 + $0x34] sm:$0xf]
  %v28 = vld [vmem:[%s0 + $0x38] sm:$0xf]
  %v29 = vld [vmem:[%s0 + $0x3c] sm:$0xf]
  %v30 = vunpack.c.l.bf16 %v14
  %v31 = vunpack.c.l.bf16 %v15
  %v32 = vunpack.c.l.bf16 %v16
  %v33 = vunpack.c.l.bf16 %v17
  %v34 = vunpack.c.l.bf16 %v18
  %v35 = vunpack.c.l.bf16 %v19
  %v36 = vunpack.c.l.bf16 %v20
  %v37 = vunpack.c.l.bf16 %v21
  %v38 = vunpack.c.l.bf16 %v22
  %v39 = vunpack.c.l.bf16 %v23
  %v40 = vunpack.c.l.bf16 %v24
  %v41 = vunpack.c.l.bf16 %v25
  %v42 = vunpack.c.l.bf16 %v26
  %v43 = vunpack.c.l.bf16 %v27
  %v44 = vunpack.c.l.bf16 %v28
  %v45 = vunpack.c.l.bf16 %v29
  %v46 = vld [vmem:[%s1] sm:$0x1]
  %v48 = vperm.slane %v46, 0
  %v50 = vmul.f32 %v30, %v48
  %v51 = vmul.f32 %v31, %v48
  %v52 = vmul.f32 %v32, %v48
  %v53 = vmul.f32 %v33, %v48
  %v54 = vmul.f32 %v34, %v48
  %v55 = vmul.f32 %v35, %v48
  %v56 = vmul.f32 %v36, %v48
  %v57 = vmul.f32 %v37, %v48
  %v58 = vmul.f32 %v38, %v48
  %v59 = vmul.f32 %v39, %v48
  %v60 = vmul.f32 %v40, %v48
  %v61 = vmul.f32 %v41, %v48
  %v62 = vmul.f32 %v42, %v48
  %v63 = vmul.f32 %v43, %v48
  %v64 = vmul.f32 %v44, %v48
  %v65 = vmul.f32 %v45, %v48
  %v66 = vld [vmem:[%s2] sm:$0x1]
  %v68 = vperm.slane %v66, 0
  %v70 = vadd.f32 %v50, %v68
  %v71 = vadd.f32 %v51, %v68
  %v72 = vadd.f32 %v52, %v68
  %v73 = vadd.f32 %v53, %v68
  %v74 = vadd.f32 %v54, %v68
  %v75 = vadd.f32 %v55, %v68
  %v76 = vadd.f32 %v56, %v68
  %v77 = vadd.f32 %v57, %v68
  %v78 = vadd.f32 %v58, %v68
  %v79 = vadd.f32 %v59, %v68
  %v80 = vadd.f32 %v60, %v68
  %v81 = vadd.f32 %v61, %v68
  %v82 = vadd.f32 %v62, %v68
  %v83 = vadd.f32 %v63, %v68
  %v84 = vadd.f32 %v64, %v68
  %v85 = vadd.f32 %v65, %v68
  %v86 = vmax.f32 %v70, 0.0
  %v87 = vmax.f32 %v71, 0.0
  %v88 = vmax.f32 %v72, 0.0
  %v89 = vmax.f32 %v73, 0.0
  %v90 = vmax.f32 %v74, 0.0
  %v91 = vmax.f32 %v75, 0.0
  %v92 = vmax.f32 %v76, 0.0
  %v93 = vmax.f32 %v77, 0.0
  %v94 = vmax.f32 %v78, 0.0
  %v95 = vmax.f32 %v79, 0.0
  %v96 = vmax.f32 %v80, 0.0
  %v97 = vmax.f32 %v81, 0.0
  %v98 = vmax.f32 %v82, 0.0
  %v99 = vmax.f32 %v83, 0.0
  %v100 = vmax.f32 %v84, 0.0
  %v101 = vmax.f32 %v85, 0.0
  %v102 = vpack.c.bf16 %v86, %v86
  %v103 = vpack.c.bf16 %v87, %v87
  %v104 = vpack.c.bf16 %v88, %v88
  %v105 = vpack.c.bf16 %v89, %v89
  %v106 = vpack.c.bf16 %v90, %v90
  %v107 = vpack.c.bf16 %v91, %v91
  %v108 = vpack.c.bf16 %v92, %v92
  %v109 = vpack.c.bf16 %v93, %v93
  %v110 = vpack.c.bf16 %v94, %v94
  %v111 = vpack.c.bf16 %v95, %v95
  %v112 = vpack.c.bf16 %v96, %v96
  %v113 = vpack.c.bf16 %v97, %v97
  %v114 = vpack.c.bf16 %v98, %v98
  %v115 = vpack.c.bf16 %v99, %v99
  %v116 = vpack.c.bf16 %v100, %v100
  %v117 = vpack.c.bf16 %v101, %v101
  %118 = vst [vmem:[%s3] sm:$0xf] %v102
  %119 = vst [vmem:[%s3 + $0x4] sm:$0xf] %v103
  %120 = vst [vmem:[%s3 + $0x8] sm:$0xf] %v104
  %121 = vst [vmem:[%s3 + $0xc] sm:$0xf] %v105
  %122 = vst [vmem:[%s3 + $0x10] sm:$0xf] %v106
  %123 = vst [vmem:[%s3 + $0x14] sm:$0xf] %v107
  %124 = vst [vmem:[%s3 + $0x18] sm:$0xf] %v108
  %125 = vst [vmem:[%s3 + $0x1c] sm:$0xf] %v109
  %126 = vst [vmem:[%s3 + $0x20] sm:$0xf] %v110
  %127 = vst [vmem:[%s3 + $0x24] sm:$0xf] %v111
  %128 = vst [vmem:[%s3 + $0x28] sm:$0xf] %v112
  %129 = vst [vmem:[%s3 + $0x2c] sm:$0xf] %v113
  %130 = vst [vmem:[%s3 + $0x30] sm:$0xf] %v114
  %131 = vst [vmem:[%s3 + $0x34] sm:$0xf] %v115
  %132 = vst [vmem:[%s3 + $0x38] sm:$0xf] %v116
  %133 = vst [vmem:[%s3 + $0x3c] sm:$0xf] %v117
  // Predicated region
  $region14: #{residual_block_forward.5} parent=0 // pred_check
    _
  $region15: #{residual_block_forward.5} parent=0 // pred_check_branch
    %135 = sbr.rel (0) target = $region17
  $region16: #{residual_block_forward.5} parent=0 // pred_region
    _
  $region17: #{residual_block_forward.5} parent=0 // pred_fallthru
    _
  // Predicated region
  $region18: #{residual_block_forward.5} parent=0 // pred_check
    _
  $region19: #{residual_block_forward.5} parent=0 // pred_check_branch
    %137 = sbr.rel (0) target = $region21
  $region20: #{residual_block_forward.5} parent=0 // pred_region
    _
  $region21: #{residual_block_forward.5} parent=0 // pred_fallthru
    _

// kernel: residual_block_forward.4
$region0: #{residual_block_forward.4}
  #allocation0 [shape = 'u32[]', space=smem, size = 0x4, offset = 0x4, fixed_abs, tag = 'smem constant byte address 0x4 - core index']
  #allocation1 [shape = 'u32[72,128]{1,0:T(1,128)}', space=vmem, size = 0x9000, scoped, tag = 'internal scratch']
  %s0 = inlined_call_operand.vmem [shape: bf16[128,36], index: 0, kind: input, shape index: {}]
  %s1 = inlined_call_operand.vmem [shape: bf16[36,128], index: 1, kind: input, shape index: {}]
  %s2 = inlined_call_operand.vmem [shape: bf16[128,128], index: 2, kind: output, shape index: {0}]
  %s3 = inlined_call_operand.vmem [shape: f32[1,2,128], index: 3, kind: output, shape index: {1}]
  %4 = xla_tuple %s2, %s3
  %s5 = sld [smem:[#allocation0]]
  $region26: #{residual_block_forward.4} parent=0
    _
  %s7 = ssub.s32 1, %s5
  %s8 = scalar_select 0, %s7, %s5
  // Predicated region
  $region2: #{residual_block_forward.4} parent=0 // pred_check
    _
  $region3: #{residual_block_forward.4} parent=0 // pred_check_branch
    %10 = sbr.rel (0) target = $region5
  $region4: #{residual_block_forward.4} parent=0 // pred_region
    _
  $region5: #{residual_block_forward.4} parent=0 // pred_fallthru
    _
  // Predicated region
  $region6: #{residual_block_forward.4} parent=0 // pred_check
    _
  $region7: #{residual_block_forward.4} parent=0 // pred_check_branch
    %12 = sbr.rel (0) target = $region9
  $region8: #{residual_block_forward.4} parent=0 // pred_region
    _
  $region9: #{residual_block_forward.4} parent=0 // pred_fallthru
    _
  %v14 = vld [vmem:[%s0] sm:$0xf]
  %v15 = vld [vmem:[%s0 + $0x4] sm:$0xf]
  %v16 = vld [vmem:[%s0 + $0x8] sm:$0xf]
  %v17 = vld [vmem:[%s0 + $0xc] sm:$0xf]
  %v18 = vld [vmem:[%s0 + $0x10] sm:$0xf]
  %v19 = vld [vmem:[%s0 + $0x14] sm:$0xf]
  %v20 = vld [vmem:[%s0 + $0x18] sm:$0xf]
  %v21 = vld [vmem:[%s0 + $0x1c] sm:$0xf]
  %v22 = vld [vmem:[%s0 + $0x20] sm:$0xf]
  %v23 = vld [vmem:[%s0 + $0x24] sm:$0xf]
  %v24 = vld [vmem:[%s0 + $0x28] sm:$0xf]
  %v25 = vld [vmem:[%s0 + $0x2c] sm:$0xf]
  %v26 = vld [vmem:[%s0 + $0x30] sm:$0xf]
  %v27 = vld [vmem:[%s0 + $0x34] sm:$0xf]
  %v28 = vld [vmem:[%s0 + $0x38] sm:$0xf]
  %v29 = vld [vmem:[%s0 + $0x3c] sm:$0xf]
  %v30 = vld [vmem:[%s1] sm:$0xf]
  %v31 = vld [vmem:[%s1 + $0x4] sm:$0xf]
  %v32 = vld [vmem:[%s1 + $0x8] sm:$0xf]
  %v33 = vld [vmem:[%s1 + $0xc] sm:$0xf]
  %v34 = vld [vmem:[%s1 + $0x10] sm:$0x3]
  %v51 = vunpack.c.l.b16 %v14
  %v52 = vunpack.c.l.b16 %v15
  %v53 = vunpack.c.l.b16 %v16
  %v54 = vunpack.c.l.b16 %v17
  %v55 = vunpack.c.l.b16 %v18
  %v56 = vunpack.c.l.b16 %v19
  %v57 = vunpack.c.l.b16 %v20
  %v58 = vunpack.c.l.b16 %v21
  %v59 = vunpack.c.l.b16 %v22
  %v60 = vunpack.c.l.b16 %v23
  %v61 = vunpack.c.l.b16 %v24
  %v62 = vunpack.c.l.b16 %v25
  %v63 = vunpack.c.l.b16 %v26
  %v64 = vunpack.c.l.b16 %v27
  %v65 = vunpack.c.l.b16 %v28
  %v66 = vunpack.c.l.b16 %v29
  %v67 = vpack.c.b16 %v52, %v51
  %v68 = vpack.c.b16 %v54, %v53
  %v69 = vpack.c.b16 %v56, %v55
  %v70 = vpack.c.b16 %v58, %v57
  %v71 = vpack.c.b16 %v60, %v59
  %v72 = vpack.c.b16 %v62, %v61
  %v73 = vpack.c.b16 %v64, %v63
  %v74 = vpack.c.b16 %v66, %v65
  %v80 = vunpack.c.l.b16 %v30
  %v81 = vunpack.c.l.b16 %v31
  %v82 = vunpack.c.l.b16 %v32
  %v83 = vunpack.c.l.b16 %v33
  %v84 = vunpack.c.l.b16 %v34
  %v85 = vpack.c.b16 %v81, %v80
  %v86 = vpack.c.b16 %v83, %v82
  %v87 = vpack.c.b16 %v84, %v84
  %vm90 = vcmask 293888
  %v92 = vsel %vm90, %v67, 0
  %v95 = vsel %vm90, %v68, 0
  %v98 = vsel %vm90, %v69, 0
  %v101 = vsel %vm90, %v70, 0
  %v104 = vsel %vm90, %v71, 0
  %v107 = vsel %vm90, %v72, 0
  %v110 = vsel %vm90, %v73, 0
  %v113 = vsel %vm90, %v74, 0
  %vm115 = vcmask 1041408
  %v117 = vsel %vm115, %v87, 0
  %119 = vmatpush.bf16.msra.mxu0 0
  %120 = vmatpush.bf16.msra.mxu0 0
  %121 = vmatpush.bf16.msra.mxu0 0
  %122 = vmatpush.bf16.msra.mxu0 0
  %123 = vmatpush.bf16.msra.mxu0 0
  %124 = vmatpush.bf16.msra.mxu0 %v117
  %125 = vmatpush.bf16.msra.mxu0 %v86
  %126 = vmatpush.bf16.msra.mxu0 %v85
  %127 = vmatmul.bf16.gmra.mxu0 %v92
  %v128 = vpop.f32.mrf.mxu0
  %v129 = vadd.f32 0.0, %v128
  %v130 = vpop.f32.mrf.mxu0
  %v131 = vadd.f32 0.0, %v130
  %132 = vmatmul.bf16.gmra.mxu0 %v95
  %v133 = vpop.f32.mrf.mxu0
  %v134 = vadd.f32 0.0, %v133
  %v135 = vpop.f32.mrf.mxu0
  %v136 = vadd.f32 0.0, %v135
  %137 = vmatmul.bf16.gmra.mxu0 %v98
  %v138 = vpop.f32.mrf.mxu0
  %v139 = vadd.f32 0.0, %v138
  %v140 = vpop.f32.mrf.mxu0
  %v141 = vadd.f32 0.0, %v140
  %142 = vmatmul.bf16.gmra.mxu0 %v101
  %v143 = vpop.f32.mrf.mxu0
  %v144 = vadd.f32 0.0, %v143
  %v145 = vpop.f32.mrf.mxu0
  %v146 = vadd.f32 0.0, %v145
  %147 = vmatmul.bf16.gmra.mxu0 %v104
  %v148 = vpop.f32.mrf.mxu0
  %v149 = vadd.f32 0.0, %v148
  %v150 = vpop.f32.mrf.mxu0
  %v151 = vadd.f32 0.0, %v150
  %152 = vmatmul.bf16.gmra.mxu0 %v107
  %v153 = vpop.f32.mrf.mxu0
  %v154 = vadd.f32 0.0, %v153
  %v155 = vpop.f32.mrf.mxu0
  %v156 = vadd.f32 0.0, %v155
  %157 = vmatmul.bf16.gmra.mxu0 %v110
  %v158 = vpop.f32.mrf.mxu0
  %v159 = vadd.f32 0.0, %v158
  %v160 = vpop.f32.mrf.mxu0
  %v161 = vadd.f32 0.0, %v160
  %162 = vmatmul.bf16.gmra.mxu0 %v113
  %v163 = vpop.f32.mrf.mxu0
  %v164 = vadd.f32 0.0, %v163
  %v165 = vpop.f32.mrf.mxu0
  %v166 = vadd.f32 0.0, %v165
  %167 = vdwg.mxu0
  %v168 = vpack.c.bf16 %v129, %v129
  %v169 = vpack.c.bf16 %v131, %v131
  %v170 = vpack.c.bf16 %v134, %v134
  %v171 = vpack.c.bf16 %v136, %v136
  %v172 = vpack.c.bf16 %v139, %v139
  %v173 = vpack.c.bf16 %v141, %v141
  %v174 = vpack.c.bf16 %v144, %v144
  %v175 = vpack.c.bf16 %v146, %v146
  %v176 = vpack.c.bf16 %v149, %v149
  %v177 = vpack.c.bf16 %v151, %v151
  %v178 = vpack.c.bf16 %v154, %v154
  %v179 = vpack.c.bf16 %v156, %v156
  %v180 = vpack.c.bf16 %v159, %v159
  %v181 = vpack.c.bf16 %v161, %v161
  %v182 = vpack.c.bf16 %v164, %v164
  %v183 = vpack.c.bf16 %v166, %v166
  %184 = vst [vmem:[%s2] sm:$0xf] %v168
  %185 = vst [vmem:[%s2 + $0x4] sm:$0xf] %v169
  %186 = vst [vmem:[%s2 + $0x8] sm:$0xf] %v170
  %187 = vst [vmem:[%s2 + $0xc] sm:$0xf] %v171
  %188 = vst [vmem:[%s2 + $0x10] sm:$0xf] %v172
  %189 = vst [vmem:[%s2 + $0x14] sm:$0xf] %v173
  %190 = vst [vmem:[%s2 + $0x18] sm:$0xf] %v174
  %191 = vst [vmem:[%s2 + $0x1c] sm:$0xf] %v175
  %192 = vst [vmem:[%s2 + $0x20] sm:$0xf] %v176
  %193 = vst [vmem:[%s2 + $0x24] sm:$0xf] %v177
  %194 = vst [vmem:[%s2 + $0x28] sm:$0xf] %v178
  %195 = vst [vmem:[%s2 + $0x2c] sm:$0xf] %v179
  %196 = vst [vmem:[%s2 + $0x30] sm:$0xf] %v180
  %197 = vst [vmem:[%s2 + $0x34] sm:$0xf] %v181
  %198 = vst [vmem:[%s2 + $0x38] sm:$0xf] %v182
  %199 = vst [vmem:[%s2 + $0x3c] sm:$0xf] %v183
  %v200 = vadd.f32 %v129, %v131
  %v201 = vadd.f32 %v200, %v134
  %v202 = vadd.f32 %v201, %v136
  %v203 = vadd.f32 %v202, %v139
  %v204 = vadd.f32 %v203, %v141
  %v205 = vadd.f32 %v204, %v144
  %v206 = vadd.f32 %v205, %v146
  %v207 = vadd.f32 %v206, %v149
  %v208 = vadd.f32 %v207, %v151
  %v209 = vadd.f32 %v208, %v154
  %v210 = vadd.f32 %v209, %v156
  %v211 = vadd.f32 %v210, %v159
  %v212 = vadd.f32 %v211, %v161
  %v213 = vadd.f32 %v212, %v164
  %v214 = vadd.f32 %v213, %v166
  %v215 = vrot.slane %v214, 4
  %v216 = vadd.f32 %v214, %v215
  %v217 = vrot.slane %v216, 2
  %v218 = vadd.f32 %v216, %v217
  %v219 = vrot.slane %v218, 1
  %v220 = vadd.f32 %v218, %v219
  %v221 = vmul.f32 %v129, %v129
  %v222 = vmul.f32 %v131, %v131
  %v223 = vmul.f32 %v134, %v134
  %v224 = vmul.f32 %v136, %v136
  %v225 = vmul.f32 %v139, %v139
  %v226 = vmul.f32 %v141, %v141
  %v227 = vmul.f32 %v144, %v144
  %v228 = vmul.f32 %v146, %v146
  %v229 = vmul.f32 %v149, %v149
  %v230 = vmul.f32 %v151, %v151
  %v231 = vmul.f32 %v154, %v154
  %v232 = vmul.f32 %v156, %v156
  %v233 = vmul.f32 %v159, %v159
  %v234 = vmul.f32 %v161, %v161
  %v235 = vmul.f32 %v164, %v164
  %v236 = vmul.f32 %v166, %v166
  %v237 = vadd.f32 %v221, %v222
  %v238 = vadd.f32 %v237, %v223
  %v239 = vadd.f32 %v238, %v224
  %v240 = vadd.f32 %v239, %v225
  %v241 = vadd.f32 %v240, %v226
  %v242 = vadd.f32 %v241, %v227
  %v243 = vadd.f32 %v242, %v228
  %v244 = vadd.f32 %v243, %v229
  %v245 = vadd.f32 %v244, %v230
  %v246 = vadd.f32 %v245, %v231
  %v247 = vadd.f32 %v246, %v232
  %v248 = vadd.f32 %v247, %v233
  %v249 = vadd.f32 %v248, %v234
  %v250 = vadd.f32 %v249, %v235
  %v251 = vadd.f32 %v250, %v236
  %v252 = vrot.slane %v251, 4
  %v253 = vadd.f32 %v251, %v252
  %v254 = vrot.slane %v253, 2
  %v255 = vadd.f32 %v253, %v254
  %v256 = vrot.slane %v255, 1
  %v257 = vadd.f32 %v255, %v256
  %vm258 = vcmask 1040384
  %v259 = vsel %vm258, %v220, %v257
  %260 = vst [vmem:[%s3] sm:$0x3] %v259
  // Predicated region
  $region10: #{residual_block_forward.4} parent=0 // pred_check
    _
  $region11: #{residual_block_forward.4} parent=0 // pred_check_branch
    %262 = sbr.rel (0) target = $region13
  $region12: #{residual_block_forward.4} parent=0 // pred_region
    _
  $region13: #{residual_block_forward.4} parent=0 // pred_fallthru
    _
  // Predicated region
  $region14: #{residual_block_forward.4} parent=0 // pred_check
    _
  $region15: #{residual_block_forward.4} parent=0 // pred_check_branch
    %264 = sbr.rel (0) target = $region17
  $region16: #{residual_block_forward.4} parent=0 // pred_region
    _
  $region17: #{residual_block_forward.4} parent=0 // pred_fallthru
    _
  // Predicated region
  $region18: #{residual_block_forward.4} parent=0 // pred_check
    _
  $region19: #{residual_block_forward.4} parent=0 // pred_check_branch
    %266 = sbr.rel (0) target = $region21
  $region20: #{residual_block_forward.4} parent=0 // pred_region
    _
  $region21: #{residual_block_forward.4} parent=0 // pred_fallthru
    _
  // Predicated region
  $region22: #{residual_block_forward.4} parent=0 // pred_check
    _
  $region23: #{residual_block_forward.4} parent=0 // pred_check_branch
    %268 = sbr.rel (0) target = $region25
  $region24: #{residual_block_forward.4} parent=0 // pred_region
    _
  $region25: #{residual_block_forward.4} parent=0 // pred_fallthru
    _

// kernel: residual_block_forward.7
$region0: #{residual_block_forward.7}
  #allocation0 [shape = 'u32[]', space=smem, size = 0x4, offset = 0x4, fixed_abs, tag = 'smem constant byte address 0x4 - core index']
  #allocation1 [shape = 'u32[72,128]{1,0:T(1,128)}', space=vmem, size = 0x9000, scoped, tag = 'internal scratch']
  %s0 = inlined_call_operand.vmem [shape: bf16[128,128], index: 0, kind: input, shape index: {}]
  %s1 = inlined_call_operand.vmem [shape: f32[1,128], index: 1, kind: input, shape index: {}]
  %s2 = inlined_call_operand.vmem [shape: f32[1,128], index: 2, kind: input, shape index: {}]
  %s3 = inlined_call_operand.vmem [shape: bf16[128,128], index: 3, kind: input, shape index: {}]
  %s4 = inlined_call_operand.vmem [shape: f32[1,128], index: 4, kind: input, shape index: {}]
  %s5 = inlined_call_operand.vmem [shape: f32[1,128], index: 5, kind: input, shape index: {}]
  %s6 = inlined_call_operand.vmem [shape: f32[128,128], index: 6, kind: output, shape index: {}]
  %s7 = sld [smem:[#allocation0]]
  $region34: #{residual_block_forward.7} parent=0
    _
  %s9 = ssub.s32 1, %s7
  %s10 = scalar_select 0, %s9, %s7
  // Predicated region
  $region2: #{residual_block_forward.7} parent=0 // pred_check
    _
  $region3: #{residual_block_forward.7} parent=0 // pred_check_branch
    %12 = sbr.rel (0) target = $region5
  $region4: #{residual_block_forward.7} parent=0 // pred_region
    _
  $region5: #{residual_block_forward.7} parent=0 // pred_fallthru
    _
  // Predicated region
  $region6: #{residual_block_forward.7} parent=0 // pred_check
    _
  $region7: #{residual_block_forward.7} parent=0 // pred_check_branch
    %14 = sbr.rel (0) target = $region9
  $region8: #{residual_block_forward.7} parent=0 // pred_region
    _
  $region9: #{residual_block_forward.7} parent=0 // pred_fallthru
    _
  // Predicated region
  $region10: #{residual_block_forward.7} parent=0 // pred_check
    _
  $region11: #{residual_block_forward.7} parent=0 // pred_check_branch
    %16 = sbr.rel (0) target = $region13
  $region12: #{residual_block_forward.7} parent=0 // pred_region
    _
  $region13: #{residual_block_forward.7} parent=0 // pred_fallthru
    _
  // Predicated region
  $region14: #{residual_block_forward.7} parent=0 // pred_check
    _
  $region15: #{residual_block_forward.7} parent=0 // pred_check_branch
    %18 = sbr.rel (0) target = $region17
  $region16: #{residual_block_forward.7} parent=0 // pred_region
    _
  $region17: #{residual_block_forward.7} parent=0 // pred_fallthru
    _
  // Predicated region
  $region18: #{residual_block_forward.7} parent=0 // pred_check
    _
  $region19: #{residual_block_forward.7} parent=0 // pred_check_branch
    %20 = sbr.rel (0) target = $region21
  $region20: #{residual_block_forward.7} parent=0 // pred_region
    _
  $region21: #{residual_block_forward.7} parent=0 // pred_fallthru
    _
  // Predicated region
  $region22: #{residual_block_forward.7} parent=0 // pred_check
    _
  $region23: #{residual_block_forward.7} parent=0 // pred_check_branch
    %22 = sbr.rel (0) target = $region25
  $region24: #{residual_block_forward.7} parent=0 // pred_region
    _
  $region25: #{residual_block_forward.7} parent=0 // pred_fallthru
    _
  %v23 = vld [vmem:[%s0] sm:$0xf]
  %v24 = vld [vmem:[%s0 + $0x4] sm:$0xf]
  %v25 = vld [vmem:[%s0 + $0x8] sm:$0xf]
  %v26 = vld [vmem:[%s0 + $0xc] sm:$0xf]
  %v27 = vld [vmem:[%s0 + $0x10] sm:$0xf]
  %v28 = vld [vmem:[%s0 + $0x14] sm:$0xf]
  %v29 = vld [vmem:[%s0 + $0x18] sm:$0xf]
  %v30 = vld [vmem:[%s0 + $0x1c] sm:$0xf]
  %v31 = vld [vmem:[%s0 + $0x20] sm:$0xf]
  %v32 = vld [vmem:[%s0 + $0x24] sm:$0xf]
  %v33 = vld [vmem:[%s0 + $0x28] sm:$0xf]
  %v34 = vld [vmem:[%s0 + $0x2c] sm:$0xf]
  %v35 = vld [vmem:[%s0 + $0x30] sm:$0xf]
  %v36 = vld [vmem:[%s0 + $0x34] sm:$0xf]
  %v37 = vld [vmem:[%s0 + $0x38] sm:$0xf]
  %v38 = vld [vmem:[%s0 + $0x3c] sm:$0xf]
  %v39 = vunpack.c.l.bf16 %v23
  %v40 = vunpack.c.l.bf16 %v24
  %v41 = vunpack.c.l.bf16 %v25
  %v42 = vunpack.c.l.bf16 %v26
  %v43 = vunpack.c.l.bf16 %v27
  %v44 = vunpack.c.l.bf16 %v28
  %v45 = vunpack.c.l.bf16 %v29
  %v46 = vunpack.c.l.bf16 %v30
  %v47 = vunpack.c.l.bf16 %v31
  %v48 = vunpack.c.l.bf16 %v32
  %v49 = vunpack.c.l.bf16 %v33
  %v50 = vunpack.c.l.bf16 %v34
  %v51 = vunpack.c.l.bf16 %v35
  %v52 = vunpack.c.l.bf16 %v36
  %v53 = vunpack.c.l.bf16 %v37
  %v54 = vunpack.c.l.bf16 %v38
  %v55 = vld [vmem:[%s1] sm:$0x1]
  %v57 = vperm.slane %v55, 0
  %v59 = vmul.f32 %v39, %v57
  %v60 = vmul.f32 %v40, %v57
  %v61 = vmul.f32 %v41, %v57
  %v62 = vmul.f32 %v42, %v57
  %v63 = vmul.f32 %v43, %v57
  %v64 = vmul.f32 %v44, %v57
  %v65 = vmul.f32 %v45, %v57
  %v66 = vmul.f32 %v46, %v57
  %v67 = vmul.f32 %v47, %v57
  %v68 = vmul.f32 %v48, %v57
  %v69 = vmul.f32 %v49, %v57
  %v70 = vmul.f32 %v50, %v57
  %v71 = vmul.f32 %v51, %v57
  %v72 = vmul.f32 %v52, %v57
  %v73 = vmul.f32 %v53, %v57
  %v74 = vmul.f32 %v54, %v57
  %v75 = vld [vmem:[%s2] sm:$0x1]
  %v77 = vperm.slane %v75, 0
  %v79 = vadd.f32 %v59, %v77
  %v80 = vadd.f32 %v60, %v77
  %v81 = vadd.f32 %v61, %v77
  %v82 = vadd.f32 %v62, %v77
  %v83 = vadd.f32 %v63, %v77
  %v84 = vadd.f32 %v64, %v77
  %v85 = vadd.f32 %v65, %v77
  %v86 = vadd.f32 %v66, %v77
  %v87 = vadd.f32 %v67, %v77
  %v88 = vadd.f32 %v68, %v77
  %v89 = vadd.f32 %v69, %v77
  %v90 = vadd.f32 %v70, %v77
  %v91 = vadd.f32 %v71, %v77
  %v92 = vadd.f32 %v72, %v77
  %v93 = vadd.f32 %v73, %v77
  %v94 = vadd.f32 %v74, %v77
  %v95 = vld [vmem:[%s3] sm:$0xf]
  %v96 = vld [vmem:[%s3 + $0x4] sm:$0xf]
  %v97 = vld [vmem:[%s3 + $0x8] sm:$0xf]
  %v98 = vld [vmem:[%s3 + $0xc] sm:$0xf]
  %v99 = vld [vmem:[%s3 + $0x10] sm:$0xf]
  %v100 = vld [vmem:[%s3 + $0x14] sm:$0xf]
  %v101 = vld [vmem:[%s3 + $0x18] sm:$0xf]
  %v102 = vld [vmem:[%s3 + $0x1c] sm:$0xf]
  %v103 = vld [vmem:[%s3 + $0x20] sm:$0xf]
  %v104 = vld [vmem:[%s3 + $0x24] sm:$0xf]
  %v105 = vld [vmem:[%s3 + $0x28] sm:$0xf]
  %v106 = vld [vmem:[%s3 + $0x2c] sm:$0xf]
  %v107 = vld [vmem:[%s3 + $0x30] sm:$0xf]
  %v108 = vld [vmem:[%s3 + $0x34] sm:$0xf]
  %v109 = vld [vmem:[%s3 + $0x38] sm:$0xf]
  %v110 = vld [vmem:[%s3 + $0x3c] sm:$0xf]
  %v111 = vunpack.c.l.bf16 %v95
  %v112 = vunpack.c.l.bf16 %v96
  %v113 = vunpack.c.l.bf16 %v97
  %v114 = vunpack.c.l.bf16 %v98
  %v115 = vunpack.c.l.bf16 %v99
  %v116 = vunpack.c.l.bf16 %v100
  %v117 = vunpack.c.l.bf16 %v101
  %v118 = vunpack.c.l.bf16 %v102
  %v119 = vunpack.c.l.bf16 %v103
  %v120 = vunpack.c.l.bf16 %v104
  %v121 = vunpack.c.l.bf16 %v105
  %v122 = vunpack.c.l.bf16 %v106
  %v123 = vunpack.c.l.bf16 %v107
  %v124 = vunpack.c.l.bf16 %v108
  %v125 = vunpack.c.l.bf16 %v109
  %v126 = vunpack.c.l.bf16 %v110
  %v127 = vld [vmem:[%s4] sm:$0x1]
  %v129 = vperm.slane %v127, 0
  %v131 = vmul.f32 %v111, %v129
  %v132 = vmul.f32 %v112, %v129
  %v133 = vmul.f32 %v113, %v129
  %v134 = vmul.f32 %v114, %v129
  %v135 = vmul.f32 %v115, %v129
  %v136 = vmul.f32 %v116, %v129
  %v137 = vmul.f32 %v117, %v129
  %v138 = vmul.f32 %v118, %v129
  %v139 = vmul.f32 %v119, %v129
  %v140 = vmul.f32 %v120, %v129
  %v141 = vmul.f32 %v121, %v129
  %v142 = vmul.f32 %v122, %v129
  %v143 = vmul.f32 %v123, %v129
  %v144 = vmul.f32 %v124, %v129
  %v145 = vmul.f32 %v125, %v129
  %v146 = vmul.f32 %v126, %v129
  %v147 = vld [vmem:[%s5] sm:$0x1]
  %v149 = vperm.slane %v147, 0
  %v151 = vadd.f32 %v131, %v149
  %v152 = vadd.f32 %v132, %v149
  %v153 = vadd.f32 %v133, %v149
  %v154 = vadd.f32 %v134, %v149
  %v155 = vadd.f32 %v135, %v149
  %v156 = vadd.f32 %v136, %v149
  %v157 = vadd.f32 %v137, %v149
  %v158 = vadd.f32 %v138, %v149
  %v159 = vadd.f32 %v139, %v149
  %v160 = vadd.f32 %v140, %v149
  %v161 = vadd.f32 %v141, %v149
  %v162 = vadd.f32 %v142, %v149
  %v163 = vadd.f32 %v143, %v149
  %v164 = vadd.f32 %v144, %v149
  %v165 = vadd.f32 %v145, %v149
  %v166 = vadd.f32 %v146, %v149
  %v167 = vadd.f32 %v79, %v151
  %v168 = vadd.f32 %v80, %v152
  %v169 = vadd.f32 %v81, %v153
  %v170 = vadd.f32 %v82, %v154
  %v171 = vadd.f32 %v83, %v155
  %v172 = vadd.f32 %v84, %v156
  %v173 = vadd.f32 %v85, %v157
  %v174 = vadd.f32 %v86, %v158
  %v175 = vadd.f32 %v87, %v159
  %v176 = vadd.f32 %v88, %v160
  %v177 = vadd.f32 %v89, %v161
  %v178 = vadd.f32 %v90, %v162
  %v179 = vadd.f32 %v91, %v163
  %v180 = vadd.f32 %v92, %v164
  %v181 = vadd.f32 %v93, %v165
  %v182 = vadd.f32 %v94, %v166
  %v183 = vmax.f32 %v167, 0.0
  %v184 = vmax.f32 %v168, 0.0
  %v185 = vmax.f32 %v169, 0.0
  %v186 = vmax.f32 %v170, 0.0
  %v187 = vmax.f32 %v171, 0.0
  %v188 = vmax.f32 %v172, 0.0
  %v189 = vmax.f32 %v173, 0.0
  %v190 = vmax.f32 %v174, 0.0
  %v191 = vmax.f32 %v175, 0.0
  %v192 = vmax.f32 %v176, 0.0
  %v193 = vmax.f32 %v177, 0.0
  %v194 = vmax.f32 %v178, 0.0
  %v195 = vmax.f32 %v179, 0.0
  %v196 = vmax.f32 %v180, 0.0
  %v197 = vmax.f32 %v181, 0.0
  %v198 = vmax.f32 %v182, 0.0
  %199 = vst [vmem:[%s6] sm:$0xff] %v183
  %200 = vst [vmem:[%s6 + $0x8] sm:$0xff] %v184
  %201 = vst [vmem:[%s6 + $0x10] sm:$0xff] %v185
  %202 = vst [vmem:[%s6 + $0x18] sm:$0xff] %v186
  %203 = vst [vmem:[%s6 + $0x20] sm:$0xff] %v187
  %204 = vst [vmem:[%s6 + $0x28] sm:$0xff] %v188
  %205 = vst [vmem:[%s6 + $0x30] sm:$0xff] %v189
  %206 = vst [vmem:[%s6 + $0x38] sm:$0xff] %v190
  %207 = vst [vmem:[%s6 + $0x40] sm:$0xff] %v191
  %208 = vst [vmem:[%s6 + $0x48] sm:$0xff] %v192
  %209 = vst [vmem:[%s6 + $0x50] sm:$0xff] %v193
  %210 = vst [vmem:[%s6 + $0x58] sm:$0xff] %v194
  %211 = vst [vmem:[%s6 + $0x60] sm:$0xff] %v195
  %212 = vst [vmem:[%s6 + $0x68] sm:$0xff] %v196
  %213 = vst [vmem:[%s6 + $0x70] sm:$0xff] %v197
  %214 = vst [vmem:[%s6 + $0x78] sm:$0xff] %v198
  // Predicated region
  $region26: #{residual_block_forward.7} parent=0 // pred_check
    _
  $region27: #{residual_block_forward.7} parent=0 // pred_check_branch
    %216 = sbr.rel (0) target = $region29
  $region28: #{residual_block_forward.7} parent=0 // pred_region
    _
  $region29: #{residual_block_forward.7} parent=0 // pred_fallthru
    _
  // Predicated region
  $region30: #{residual_block_forward.7} parent=0 // pred_check
    _
  $region31: #{residual_block_forward.7} parent=0 // pred_check_branch
    %218 = sbr.rel (0) target = $region33
  $region32: #{residual_block_forward.7} parent=0 // pred_region
    _
  $region33: #{residual_block_forward.7} parent=0 // pred_fallthru
    _

// kernel: residual_block_forward.6
$region0: #{residual_block_forward.6}
  #allocation0 [shape = 'u32[]', space=smem, size = 0x4, offset = 0x4, fixed_abs, tag = 'smem constant byte address 0x4 - core index']
  #allocation1 [shape = 'u32[72,128]{1,0:T(1,128)}', space=vmem, size = 0x9000, scoped, tag = 'internal scratch']
  %s0 = inlined_call_operand.vmem [shape: bf16[128,72], index: 0, kind: input, shape index: {}]
  %s1 = inlined_call_operand.vmem [shape: bf16[72,128], index: 1, kind: input, shape index: {}]
  %s2 = inlined_call_operand.vmem [shape: bf16[128,4], index: 2, kind: input, shape index: {}]
  %s3 = inlined_call_operand.vmem [shape: bf16[4,128], index: 3, kind: input, shape index: {}]
  %s4 = inlined_call_operand.vmem [shape: bf16[128,128], index: 4, kind: output, shape index: {0}]
  %s5 = inlined_call_operand.vmem [shape: f32[1,2,128], index: 5, kind: output, shape index: {1}]
  %s6 = inlined_call_operand.vmem [shape: bf16[128,128], index: 6, kind: output, shape index: {2}]
  %s7 = inlined_call_operand.vmem [shape: f32[1,2,128], index: 7, kind: output, shape index: {3}]
  %8 = xla_tuple %s4, %s5, %s6, %s7
  %s9 = sld [smem:[#allocation0]]
  $region50: #{residual_block_forward.6} parent=0
    _
  %s11 = ssub.s32 1, %s9
  %s12 = scalar_select 0, %s11, %s9
  // Predicated region
  $region2: #{residual_block_forward.6} parent=0 // pred_check
    _
  $region3: #{residual_block_forward.6} parent=0 // pred_check_branch
    %14 = sbr.rel (0) target = $region5
  $region4: #{residual_block_forward.6} parent=0 // pred_region
    _
  $region5: #{residual_block_forward.6} parent=0 // pred_fallthru
    _
  // Predicated region
  $region6: #{residual_block_forward.6} parent=0 // pred_check
    _
  $region7: #{residual_block_forward.6} parent=0 // pred_check_branch
    %16 = sbr.rel (0) target = $region9
  $region8: #{residual_block_forward.6} parent=0 // pred_region
    _
  $region9: #{residual_block_forward.6} parent=0 // pred_fallthru
    _
  // Predicated region
  $region10: #{residual_block_forward.6} parent=0 // pred_check
    _
  $region11: #{residual_block_forward.6} parent=0 // pred_check_branch
    %18 = sbr.rel (0) target = $region13
  $region12: #{residual_block_forward.6} parent=0 // pred_region
    _
  $region13: #{residual_block_forward.6} parent=0 // pred_fallthru
    _
  // Predicated region
  $region14: #{residual_block_forward.6} parent=0 // pred_check
    _
  $region15: #{residual_block_forward.6} parent=0 // pred_check_branch
    %20 = sbr.rel (0) target = $region17
  $region16: #{residual_block_forward.6} parent=0 // pred_region
    _
  $region17: #{residual_block_forward.6} parent=0 // pred_fallthru
    _
  %v22 = vld [vmem:[%s0] sm:$0xf]
  %v23 = vld [vmem:[%s0 + $0x4] sm:$0xf]
  %v24 = vld [vmem:[%s0 + $0x8] sm:$0xf]
  %v25 = vld [vmem:[%s0 + $0xc] sm:$0xf]
  %v26 = vld [vmem:[%s0 + $0x10] sm:$0xf]
  %v27 = vld [vmem:[%s0 + $0x14] sm:$0xf]
  %v28 = vld [vmem:[%s0 + $0x18] sm:$0xf]
  %v29 = vld [vmem:[%s0 + $0x1c] sm:$0xf]
  %v30 = vld [vmem:[%s0 + $0x20] sm:$0xf]
  %v31 = vld [vmem:[%s0 + $0x24] sm:$0xf]
  %v32 = vld [vmem:[%s0 + $0x28] sm:$0xf]
  %v33 = vld [vmem:[%s0 + $0x2c] sm:$0xf]
  %v34 = vld [vmem:[%s0 + $0x30] sm:$0xf]
  %v35 = vld [vmem:[%s0 + $0x34] sm:$0xf]
  %v36 = vld [vmem:[%s0 + $0x38] sm:$0xf]
  %v37 = vld [vmem:[%s0 + $0x3c] sm:$0xf]
  %v38 = vld [vmem:[%s1] sm:$0xf]
  %v39 = vld [vmem:[%s1 + $0x4] sm:$0xf]
  %v40 = vld [vmem:[%s1 + $0x8] sm:$0xf]
  %v41 = vld [vmem:[%s1 + $0xc] sm:$0xf]
  %v42 = vld [vmem:[%s1 + $0x10] sm:$0xf]
  %v43 = vld [vmem:[%s1 + $0x14] sm:$0xf]
  %v44 = vld [vmem:[%s1 + $0x18] sm:$0xf]
  %v45 = vld [vmem:[%s1 + $0x1c] sm:$0xf]
  %v46 = vld [vmem:[%s1 + $0x20] sm:$0xf]
  %v63 = vunpack.c.l.b16 %v22
  %v64 = vunpack.c.l.b16 %v23
  %v65 = vunpack.c.l.b16 %v24
  %v66 = vunpack.c.l.b16 %v25
  %v67 = vunpack.c.l.b16 %v26
  %v68 = vunpack.c.l.b16 %v27
  %v69 = vunpack.c.l.b16 %v28
  %v70 = vunpack.c.l.b16 %v29
  %v71 = vunpack.c.l.b16 %v30
  %v72 = vunpack.c.l.b16 %v31
  %v73 = vunpack.c.l.b16 %v32
  %v74 = vunpack.c.l.b16 %v33
  %v75 = vunpack.c.l.b16 %v34
  %v76 = vunpack.c.l.b16 %v35
  %v77 = vunpack.c.l.b16 %v36
  %v78 = vunpack.c.l.b16 %v37
  %v79 = vpack.c.b16 %v64, %v63
  %v80 = vpack.c.b16 %v66, %v65
  %v81 = vpack.c.b16 %v68, %v67
  %v82 = vpack.c.b16 %v70, %v69
  %v83 = vpack.c.b16 %v72, %v71
  %v84 = vpack.c.b16 %v74, %v73
  %v85 = vpack.c.b16 %v76, %v75
  %v86 = vpack.c.b16 %v78, %v77
  %v96 = vunpack.c.l.b16 %v38
  %v97 = vunpack.c.l.b16 %v39
  %v98 = vunpack.c.l.b16 %v40
  %v99 = vunpack.c.l.b16 %v41
  %v100 = vunpack.c.l.b16 %v42
  %v101 = vunpack.c.l.b16 %v43
  %v102 = vunpack.c.l.b16 %v44
  %v103 = vunpack.c.l.b16 %v45
  %v104 = vunpack.c.l.b16 %v46
  %v105 = vpack.c.b16 %v97, %v96
  %v106 = vpack.c.b16 %v99, %v98
  %v107 = vpack.c.b16 %v101, %v100
  %v108 = vpack.c.b16 %v103, %v102
  %v109 = vpack.c.b16 %v104, %v104
  %vm114 = vcmask 588800
  %v116 = vsel %vm114, %v79, 0
  %v119 = vsel %vm114, %v80, 0
  %v122 = vsel %vm114, %v81, 0
  %v125 = vsel %vm114, %v82, 0
  %v128 = vsel %vm114, %v83, 0
  %v131 = vsel %vm114, %v84, 0
  %v134 = vsel %vm114, %v85, 0
  %v137 = vsel %vm114, %v86, 0
  %vm139 = vcmask 1043456
  %v141 = vsel %vm139, %v109, 0
  %143 = vmatpush.bf16.msra.mxu0 0
  %144 = vmatpush.bf16.msra.mxu0 0
  %145 = vmatpush.bf16.msra.mxu0 0
  %146 = vmatpush.bf16.msra.mxu0 %v141
  %147 = vmatpush.bf16.msra.mxu0 %v108
  %148 = vmatpush.bf16.msra.mxu0 %v107
  %149 = vmatpush.bf16.msra.mxu0 %v106
  %150 = vmatpush.bf16.msra.mxu0 %v105
  %151 = vmatmul.bf16.gmra.mxu0 %v116
  %v152 = vpop.f32.mrf.mxu0
  %v153 = vadd.f32 0.0, %v152
  %v154 = vpop.f32.mrf.mxu0
  %v155 = vadd.f32 0.0, %v154
  %156 = vmatmul.bf16.gmra.mxu0 %v119
  %v157 = vpop.f32.mrf.mxu0
  %v158 = vadd.f32 0.0, %v157
  %v159 = vpop.f32.mrf.mxu0
  %v160 = vadd.f32 0.0, %v159
  %161 = vmatmul.bf16.gmra.mxu0 %v122
  %v162 = vpop.f32.mrf.mxu0
  %v163 = vadd.f32 0.0, %v162
  %v164 = vpop.f32.mrf.mxu0
  %v165 = vadd.f32 0.0, %v164
  %166 = vmatmul.bf16.gmra.mxu0 %v125
  %v167 = vpop.f32.mrf.mxu0
  %v168 = vadd.f32 0.0, %v167
  %v169 = vpop.f32.mrf.mxu0
  %v170 = vadd.f32 0.0, %v169
  %171 = vmatmul.bf16.gmra.mxu0 %v128
  %v172 = vpop.f32.mrf.mxu0
  %v173 = vadd.f32 0.0, %v172
  %v174 = vpop.f32.mrf.mxu0
  %v175 = vadd.f32 0.0, %v174
  %176 = vmatmul.bf16.gmra.mxu0 %v131
  %v177 = vpop.f32.mrf.mxu0
  %v178 = vadd.f32 0.0, %v177
  %v179 = vpop.f32.mrf.mxu0
  %v180 = vadd.f32 0.0, %v179
  %181 = vmatmul.bf16.gmra.mxu0 %v134
  %v182 = vpop.f32.mrf.mxu0
  %v183 = vadd.f32 0.0, %v182
  %v184 = vpop.f32.mrf.mxu0
  %v185 = vadd.f32 0.0, %v184
  %186 = vmatmul.bf16.gmra.mxu0 %v137
  %v187 = vpop.f32.mrf.mxu0
  %v188 = vadd.f32 0.0, %v187
  %v189 = vpop.f32.mrf.mxu0
  %v190 = vadd.f32 0.0, %v189
  %191 = vdwg.mxu0
  %v192 = vpack.c.bf16 %v153, %v153
  %v193 = vpack.c.bf16 %v155, %v155
  %v194 = vpack.c.bf16 %v158, %v158
  %v195 = vpack.c.bf16 %v160, %v160
  %v196 = vpack.c.bf16 %v163, %v163
  %v197 = vpack.c.bf16 %v165, %v165
  %v198 = vpack.c.bf16 %v168, %v168
  %v199 = vpack.c.bf16 %v170, %v170
  %v200 = vpack.c.bf16 %v173, %v173
  %v201 = vpack.c.bf16 %v175, %v175
  %v202 = vpack.c.bf16 %v178, %v178
  %v203 = vpack.c.bf16 %v180, %v180
  %v204 = vpack.c.bf16 %v183, %v183
  %v205 = vpack.c.bf16 %v185, %v185
  %v206 = vpack.c.bf16 %v188, %v188
  %v207 = vpack.c.bf16 %v190, %v190
  %208 = vst [vmem:[%s4] sm:$0xf] %v192
  %209 = vst [vmem:[%s4 + $0x4] sm:$0xf] %v193
  %210 = vst [vmem:[%s4 + $0x8] sm:$0xf] %v194
  %211 = vst [vmem:[%s4 + $0xc] sm:$0xf] %v195
  %212 = vst [vmem:[%s4 + $0x10] sm:$0xf] %v196
  %213 = vst [vmem:[%s4 + $0x14] sm:$0xf] %v197
  %214 = vst [vmem:[%s4 + $0x18] sm:$0xf] %v198
  %215 = vst [vmem:[%s4 + $0x1c] sm:$0xf] %v199
  %216 = vst [vmem:[%s4 + $0x20] sm:$0xf] %v200
  %217 = vst [vmem:[%s4 + $0x24] sm:$0xf] %v201
  %218 = vst [vmem:[%s4 + $0x28] sm:$0xf] %v202
  %219 = vst [vmem:[%s4 + $0x2c] sm:$0xf] %v203
  %220 = vst [vmem:[%s4 + $0x30] sm:$0xf] %v204
  %221 = vst [vmem:[%s4 + $0x34] sm:$0xf] %v205
  %222 = vst [vmem:[%s4 + $0x38] sm:$0xf] %v206
  %223 = vst [vmem:[%s4 + $0x3c] sm:$0xf] %v207
  %v224 = vadd.f32 %v153, %v155
  %v225 = vadd.f32 %v224, %v158
  %v226 = vadd.f32 %v225, %v160
  %v227 = vadd.f32 %v226, %v163
  %v228 = vadd.f32 %v227, %v165
  %v229 = vadd.f32 %v228, %v168
  %v230 = vadd.f32 %v229, %v170
  %v231 = vadd.f32 %v230, %v173
  %v232 = vadd.f32 %v231, %v175
  %v233 = vadd.f32 %v232, %v178
  %v234 = vadd.f32 %v233, %v180
  %v235 = vadd.f32 %v234, %v183
  %v236 = vadd.f32 %v235, %v185
  %v237 = vadd.f32 %v236, %v188
  %v238 = vadd.f32 %v237, %v190
  %v239 = vrot.slane %v238, 4
  %v240 = vadd.f32 %v238, %v239
  %v241 = vrot.slane %v240, 2
  %v242 = vadd.f32 %v240, %v241
  %v243 = vrot.slane %v242, 1
  %v244 = vadd.f32 %v242, %v243
  %v245 = vmul.f32 %v153, %v153
  %v246 = vmul.f32 %v155, %v155
  %v247 = vmul.f32 %v158, %v158
  %v248 = vmul.f32 %v160, %v160
  %v249 = vmul.f32 %v163, %v163
  %v250 = vmul.f32 %v165, %v165
  %v251 = vmul.f32 %v168, %v168
  %v252 = vmul.f32 %v170, %v170
  %v253 = vmul.f32 %v173, %v173
  %v254 = vmul.f32 %v175, %v175
  %v255 = vmul.f32 %v178, %v178
  %v256 = vmul.f32 %v180, %v180
  %v257 = vmul.f32 %v183, %v183
  %v258 = vmul.f32 %v185, %v185
  %v259 = vmul.f32 %v188, %v188
  %v260 = vmul.f32 %v190, %v190
  %v261 = vadd.f32 %v245, %v246
  %v262 = vadd.f32 %v261, %v247
  %v263 = vadd.f32 %v262, %v248
  %v264 = vadd.f32 %v263, %v249
  %v265 = vadd.f32 %v264, %v250
  %v266 = vadd.f32 %v265, %v251
  %v267 = vadd.f32 %v266, %v252
  %v268 = vadd.f32 %v267, %v253
  %v269 = vadd.f32 %v268, %v254
  %v270 = vadd.f32 %v269, %v255
  %v271 = vadd.f32 %v270, %v256
  %v272 = vadd.f32 %v271, %v257
  %v273 = vadd.f32 %v272, %v258
  %v274 = vadd.f32 %v273, %v259
  %v275 = vadd.f32 %v274, %v260
  %v276 = vrot.slane %v275, 4
  %v277 = vadd.f32 %v275, %v276
  %v278 = vrot.slane %v277, 2
  %v279 = vadd.f32 %v277, %v278
  %v280 = vrot.slane %v279, 1
  %v281 = vadd.f32 %v279, %v280
  %vm282 = vcmask 1040384
  %v283 = vsel %vm282, %v244, %v281
  %284 = vst [vmem:[%s5] sm:$0x3] %v283
  %v285 = vld [vmem:[%s2] sm:$0xf]
  %v286 = vld [vmem:[%s2 + $0x4] sm:$0xf]
  %v287 = vld [vmem:[%s2 + $0x8] sm:$0xf]
  %v288 = vld [vmem:[%s2 + $0xc] sm:$0xf]
  %v289 = vld [vmem:[%s2 + $0x10] sm:$0xf]
  %v290 = vld [vmem:[%s2 + $0x14] sm:$0xf]
  %v291 = vld [vmem:[%s2 + $0x18] sm:$0xf]
  %v292 = vld [vmem:[%s2 + $0x1c] sm:$0xf]
  %v293 = vld [vmem:[%s2 + $0x20] sm:$0xf]
  %v294 = vld [vmem:[%s2 + $0x24] sm:$0xf]
  %v295 = vld [vmem:[%s2 + $0x28] sm:$0xf]
  %v296 = vld [vmem:[%s2 + $0x2c] sm:$0xf]
  %v297 = vld [vmem:[%s2 + $0x30] sm:$0xf]
  %v298 = vld [vmem:[%s2 + $0x34] sm:$0xf]
  %v299 = vld [vmem:[%s2 + $0x38] sm:$0xf]
  %v300 = vld [vmem:[%s2 + $0x3c] sm:$0xf]
  %v301 = vld [vmem:[%s3] sm:$0x3]
  %v318 = vunpack.c.l.b16 %v285
  %v319 = vunpack.c.l.b16 %v286
  %v320 = vunpack.c.l.b16 %v287
  %v321 = vunpack.c.l.b16 %v288
  %v322 = vunpack.c.l.b16 %v289
  %v323 = vunpack.c.l.b16 %v290
  %v324 = vunpack.c.l.b16 %v291
  %v325 = vunpack.c.l.b16 %v292
  %v326 = vunpack.c.l.b16 %v293
  %v327 = vunpack.c.l.b16 %v294
  %v328 = vunpack.c.l.b16 %v295
  %v329 = vunpack.c.l.b16 %v296
  %v330 = vunpack.c.l.b16 %v297
  %v331 = vunpack.c.l.b16 %v298
  %v332 = vunpack.c.l.b16 %v299
  %v333 = vunpack.c.l.b16 %v300
  %v334 = vpack.c.b16 %v319, %v318
  %v335 = vpack.c.b16 %v321, %v320
  %v336 = vpack.c.b16 %v323, %v322
  %v337 = vpack.c.b16 %v325, %v324
  %v338 = vpack.c.b16 %v327, %v326
  %v339 = vpack.c.b16 %v329, %v328
  %v340 = vpack.c.b16 %v331, %v330
  %v341 = vpack.c.b16 %v333, %v332
  %vm342 = vcmask 31744
  %v344 = vsel %vm342, %v334, 0
  %v347 = vsel %vm342, %v335, 0
  %v350 = vsel %vm342, %v336, 0
  %v353 = vsel %vm342, %v337, 0
  %v356 = vsel %vm342, %v338, 0
  %v359 = vsel %vm342, %v339, 0
  %v362 = vsel %vm342, %v340, 0
  %v365 = vsel %vm342, %v341, 0
  %vm367 = vcmask 1041408
  %v369 = vsel %vm367, %v301, 0
  %371 = vmatpush.bf16.msra.mxu0 0
  %372 = vmatpush.bf16.msra.mxu0 0
  %373 = vmatpush.bf16.msra.mxu0 0
  %374 = vmatpush.bf16.msra.mxu0 0
  %375 = vmatpush.bf16.msra.mxu0 0
  %376 = vmatpush.bf16.msra.mxu0 0
  %377 = vmatpush.bf16.msra.mxu0 0
  %378 = vmatpush.bf16.msra.mxu0 %v369
  %379 = vmatmul.bf16.gmra.mxu0 %v344
  %v380 = vpop.f32.mrf.mxu0
  %v381 = vadd.f32 0.0, %v380
  %v382 = vpop.f32.mrf.mxu0
  %v383 = vadd.f32 0.0, %v382
  %384 = vmatmul.bf16.gmra.mxu0 %v347
  %v385 = vpop.f32.mrf.mxu0
  %v386 = vadd.f32 0.0, %v385
  %v387 = vpop.f32.mrf.mxu0
  %v388 = vadd.f32 0.0, %v387
  %389 = vmatmul.bf16.gmra.mxu0 %v350
  %v390 = vpop.f32.mrf.mxu0
  %v391 = vadd.f32 0.0, %v390
  %v392 = vpop.f32.mrf.mxu0
  %v393 = vadd.f32 0.0, %v392
  %394 = vmatmul.bf16.gmra.mxu0 %v353
  %v395 = vpop.f32.mrf.mxu0
  %v396 = vadd.f32 0.0, %v395
  %v397 = vpop.f32.mrf.mxu0
  %v398 = vadd.f32 0.0, %v397
  %399 = vmatmul.bf16.gmra.mxu0 %v356
  %v400 = vpop.f32.mrf.mxu0
  %v401 = vadd.f32 0.0, %v400
  %v402 = vpop.f32.mrf.mxu0
  %v403 = vadd.f32 0.0, %v402
  %404 = vmatmul.bf16.gmra.mxu0 %v359
  %v405 = vpop.f32.mrf.mxu0
  %v406 = vadd.f32 0.0, %v405
  %v407 = vpop.f32.mrf.mxu0
  %v408 = vadd.f32 0.0, %v407
  %409 = vmatmul.bf16.gmra.mxu0 %v362
  %v410 = vpop.f32.mrf.mxu0
  %v411 = vadd.f32 0.0, %v410
  %v412 = vpop.f32.mrf.mxu0
  %v413 = vadd.f32 0.0, %v412
  %414 = vmatmul.bf16.gmra.mxu0 %v365
  %v415 = vpop.f32.mrf.mxu0
  %v416 = vadd.f32 0.0, %v415
  %v417 = vpop.f32.mrf.mxu0
  %v418 = vadd.f32 0.0, %v417
  %419 = vdwg.mxu0
  %v420 = vpack.c.bf16 %v381, %v381
  %v421 = vpack.c.bf16 %v383, %v383
  %v422 = vpack.c.bf16 %v386, %v386
  %v423 = vpack.c.bf16 %v388, %v388
  %v424 = vpack.c.bf16 %v391, %v391
  %v425 = vpack.c.bf16 %v393, %v393
  %v426 = vpack.c.bf16 %v396, %v396
  %v427 = vpack.c.bf16 %v398, %v398
  %v428 = vpack.c.bf16 %v401, %v401
  %v429 = vpack.c.bf16 %v403, %v403
  %v430 = vpack.c.bf16 %v406, %v406
  %v431 = vpack.c.bf16 %v408, %v408
  %v432 = vpack.c.bf16 %v411, %v411
  %v433 = vpack.c.bf16 %v413, %v413
  %v434 = vpack.c.bf16 %v416, %v416
  %v435 = vpack.c.bf16 %v418, %v418
  %436 = vst [vmem:[%s6] sm:$0xf] %v420
  %437 = vst [vmem:[%s6 + $0x4] sm:$0xf] %v421
  %438 = vst [vmem:[%s6 + $0x8] sm:$0xf] %v422
  %439 = vst [vmem:[%s6 + $0xc] sm:$0xf] %v423
  %440 = vst [vmem:[%s6 + $0x10] sm:$0xf] %v424
  %441 = vst [vmem:[%s6 + $0x14] sm:$0xf] %v425
  %442 = vst [vmem:[%s6 + $0x18] sm:$0xf] %v426
  %443 = vst [vmem:[%s6 + $0x1c] sm:$0xf] %v427
  %444 = vst [vmem:[%s6 + $0x20] sm:$0xf] %v428
  %445 = vst [vmem:[%s6 + $0x24] sm:$0xf] %v429
  %446 = vst [vmem:[%s6 + $0x28] sm:$0xf] %v430
  %447 = vst [vmem:[%s6 + $0x2c] sm:$0xf] %v431
  %448 = vst [vmem:[%s6 + $0x30] sm:$0xf] %v432
  %449 = vst [vmem:[%s6 + $0x34] sm:$0xf] %v433
  %450 = vst [vmem:[%s6 + $0x38] sm:$0xf] %v434
  %451 = vst [vmem:[%s6 + $0x3c] sm:$0xf] %v435
  %v452 = vadd.f32 %v381, %v383
  %v453 = vadd.f32 %v452, %v386
  %v454 = vadd.f32 %v453, %v388
  %v455 = vadd.f32 %v454, %v391
  %v456 = vadd.f32 %v455, %v393
  %v457 = vadd.f32 %v456, %v396
  %v458 = vadd.f32 %v457, %v398
  %v459 = vadd.f32 %v458, %v401
  %v460 = vadd.f32 %v459, %v403
  %v461 = vadd.f32 %v460, %v406
  %v462 = vadd.f32 %v461, %v408
  %v463 = vadd.f32 %v462, %v411
  %v464 = vadd.f32 %v463, %v413
  %v465 = vadd.f32 %v464, %v416
  %v466 = vadd.f32 %v465, %v418
  %v467 = vrot.slane %v466, 4
  %v468 = vadd.f32 %v466, %v467
  %v469 = vrot.slane %v468, 2
  %v470 = vadd.f32 %v468, %v469
  %v471 = vrot.slane %v470, 1
  %v472 = vadd.f32 %v470, %v471
  %v473 = vmul.f32 %v381, %v381
  %v474 = vmul.f32 %v383, %v383
  %v475 = vmul.f32 %v386, %v386
  %v476 = vmul.f32 %v388, %v388
  %v477 = vmul.f32 %v391, %v391
  %v478 = vmul.f32 %v393, %v393
  %v479 = vmul.f32 %v396, %v396
  %v480 = vmul.f32 %v398, %v398
  %v481 = vmul.f32 %v401, %v401
  %v482 = vmul.f32 %v403, %v403
  %v483 = vmul.f32 %v406, %v406
  %v484 = vmul.f32 %v408, %v408
  %v485 = vmul.f32 %v411, %v411
  %v486 = vmul.f32 %v413, %v413
  %v487 = vmul.f32 %v416, %v416
  %v488 = vmul.f32 %v418, %v418
  %v489 = vadd.f32 %v473, %v474
  %v490 = vadd.f32 %v489, %v475
  %v491 = vadd.f32 %v490, %v476
  %v492 = vadd.f32 %v491, %v477
  %v493 = vadd.f32 %v492, %v478
  %v494 = vadd.f32 %v493, %v479
  %v495 = vadd.f32 %v494, %v480
  %v496 = vadd.f32 %v495, %v481
  %v497 = vadd.f32 %v496, %v482
  %v498 = vadd.f32 %v497, %v483
  %v499 = vadd.f32 %v498, %v484
  %v500 = vadd.f32 %v499, %v485
  %v501 = vadd.f32 %v500, %v486
  %v502 = vadd.f32 %v501, %v487
  %v503 = vadd.f32 %v502, %v488
  %v504 = vrot.slane %v503, 4
  %v505 = vadd.f32 %v503, %v504
  %v506 = vrot.slane %v505, 2
  %v507 = vadd.f32 %v505, %v506
  %v508 = vrot.slane %v507, 1
  %v509 = vadd.f32 %v507, %v508
  %v510 = vsel %vm282, %v472, %v509
  %511 = vst [vmem:[%s7] sm:$0x3] %v510
  // Predicated region
  $region18: #{residual_block_forward.6} parent=0 // pred_check
    _
  $region19: #{residual_block_forward.6} parent=0 // pred_check_branch
    %513 = sbr.rel (0) target = $region21
  $region20: #{residual_block_forward.6} parent=0 // pred_region
    _
  $region21: #{residual_block_forward.6} parent=0 // pred_fallthru
    _
  // Predicated region
  $region22: #{residual_block_forward.6} parent=0 // pred_check
    _
  $region23: #{residual_block_forward.6} parent=0 // pred_check_branch
    %515 = sbr.rel (0) target = $region25
  $region24: #{residual_block_forward.6} parent=0 // pred_region
    _
  $region25: #{residual_block_forward.6} parent=0 // pred_fallthru
    _
  // Predicated region
  $region26: #{residual_block_forward.6} parent=0 // pred_check
    _
  $region27: #{residual_block_forward.6} parent=0 // pred_check_branch
    %517 = sbr.rel (0) target = $region29
  $region28: #{residual_block_forward.6} parent=0 // pred_region
    _
  $region29: #{residual_block_forward.6} parent=0 // pred_fallthru
    _
  // Predicated region
  $region30: #{residual_block_forward.6} parent=0 // pred_check
    _
  $region31: #{residual_block_forward.6} parent=0 // pred_check_branch
    %519 = sbr.rel (0) target = $region33
  $region32: #{residual_block_forward.6} parent=0 // pred_region
    _
  $region33: #{residual_block_forward.6} parent=0 // pred_fallthru
    _
  // Predicated region
  $region34: #{residual_block_forward.6} parent=0 // pred_check
    _
  $region35: #{residual_block_forward.6} parent=0 // pred_check_branch
    %521 = sbr.rel (0) target = $region37
  $region36: #{residual_block_forward.6} parent=0 // pred_region
    _
  $region37: #{residual_block_forward.6} parent=0 // pred_fallthru
    _
  // Predicated region
  $region38: #{residual_block_forward.6} parent=0 // pred_check
    _
  $region39: #{residual_block_forward.6} parent=0 // pred_check_branch
    %523 = sbr.rel (0) target = $region41
  $region40: #{residual_block_forward.6} parent=0 // pred_region
    _
  $region41: #{residual_block_forward.6} parent=0 // pred_fallthru
    _
  // Predicated region
  $region42: #{residual_block_forward.6} parent=0 // pred_check
    _
  $region43: #{residual_block_forward.6} parent=0 // pred_check_branch
    %525 = sbr.rel (0) target = $region45
  $region44: #{residual_block_forward.6} parent=0 // pred_region
    _
  $region45: #{residual_block_forward.6} parent=0 // pred_fallthru
    _
  // Predicated region
  $region46: #{residual_block_forward.6} parent=0 // pred_check
    _
  $region47: #{residual_block_forward.6} parent=0 // pred_check_branch
    %527 = sbr.rel (0) target = $region49
  $region48: #{residual_block_forward.6} parent=0 // pred_region
    _
  $region49: #{residual_block_forward.6} parent=0 // pred_fallthru
    _

</llo_original>
